<compile_context>
chip_gen: v5e
topology: v5e:2x2
jax: 0.10.0
libtpu: 0.0.40
codegen_flags: <defaults>
</compile_context>

<pallas_src>
import jax
import jax.numpy as jnp
from jax import lax
from jax.experimental import pallas as pl
from jax.experimental.pallas import tpu as pltpu


def _round_up(x, m):
    return ((x + m - 1) // m) * m


def _largest_divisor_tile(total, t_max):
    """Largest multiple of 128 that divides `total` (itself a 128-multiple), <= t_max."""
    best = 128
    t = 256
    while t <= min(total, t_max):
        if total % t == 0:
            best = t
        t += 128
    return best


def shared_layer_kernel(x_ref, w_ref, b_ref, o_ref):
    k = pl.program_id(2)

    @pl.when(k == 0)
    def _():
        # Output block is the accumulator (resident across k); init with bias.
        o_ref[...] = jnp.broadcast_to(b_ref[...], o_ref.shape)

    o_ref[...] += jnp.dot(
        x_ref[...], w_ref[...], preferred_element_type=jnp.float32
    )

    @pl.when(k == pl.num_programs(2) - 1)
    def _():
        # Epilogue: in-place ReLU (lane-dense, unmasked vst).
        o_ref[...] = jnp.maximum(o_ref[...], 0.0)


def prepare_shared_layer(w, b):
    """Pad weight/bias to lane-dense (128-multiple) shapes ONCE, at parameter init.

    w: (D, H) float32  (transpose of PyTorch fc1.weight, which is (H, D))
    b: (H,)   float32
    """
    D, H = w.shape
    Dp = _round_up(D, 128)
    Hp = _round_up(H, 128)
    wp = w if (Dp == D and Hp == H) else jnp.pad(w, ((0, Dp - D), (0, Hp - H)))
    bp = (b if Hp == H else jnp.pad(b, (0, Hp - H))).reshape(1, Hp)
    return {"w": w, "b": b, "wp": wp, "bp": bp, "D": D, "H": H, "Dp": Dp, "Hp": Hp}


def shared_layer_fwd(params, x, *, tm_max=256, tn_max=512, tk_max=512,
                     tiny_flop_threshold=1_000_000):
    """Forward pass of SharedLayer: relu(x @ W + b)."""
    B, D = x.shape
    assert D == params["D"], "input feature dim mismatch"
    H, Dp, Hp = params["H"], params["Dp"], params["Hp"]

    # Structural fix for tiny problems: the pallas launch + pad/slice overhead
    # dwarfs the few KFLOPs of compute, so just use plain XLA.
    if B * D * H < tiny_flop_threshold:
        y = jnp.dot(x, params["w"], precision=lax.Precision.HIGHEST) + params["b"]
        return jnp.maximum(y, 0.0)

    # --- tile selection (tk/tn divide the pre-padded Dp/Hp, so no per-call W/x
    #     padding along K/N; tm balanced so M padding stays small) ---
    tk = _largest_divisor_tile(Dp, tk_max)
    tn = _largest_divisor_tile(Hp, tn_max)

    n_m = pl.cdiv(B, tm_max)
    tm = _round_up(pl.cdiv(B, n_m), 8)
    Bp = _round_up(B, tm)

    # v7x has 2 TensorCores: make sure a "parallel" axis has >= 2 blocks.
    if Bp // tm == 1 and Hp // tn == 1 and (Hp // 2) % 128 == 0:
        tn = Hp // 2

    xp = x
    if Bp != B or Dp != D:
        xp = jnp.pad(x, ((0, Bp - B), (0, Dp - D)))

    grid = (Bp // tm, Hp // tn, Dp // tk)

    out = pl.pallas_call(
        shared_layer_kernel,
        out_shape=jax.ShapeDtypeStruct((Bp, Hp), jnp.float32),
        grid_spec=pltpu.PrefetchScalarGridSpec(
            num_scalar_prefetch=0,
            grid=grid,
            in_specs=[
                pl.BlockSpec((tm, tk), lambda i, j, k: (i, k)),   # x tile
                pl.BlockSpec((tk, tn), lambda i, j, k: (k, j)),   # W tile
                pl.BlockSpec((1, tn), lambda i, j, k: (0, j)),    # bias tile
            ],
            out_specs=pl.BlockSpec((tm, tn), lambda i, j, k: (i, j)),
        ),
        compiler_params=pltpu.CompilerParams(
            dimension_semantics=("parallel", "parallel", "arbitrary"),
        ),
        cost_estimate=pl.CostEstimate(
            flops=2 * Bp * Dp * Hp,
            transcendentals=0,
            bytes_accessed=4 * (Bp * Dp + Dp * Hp + Bp * Hp + Hp),
        ),
    )(xp, params["wp"], params["bp"])

    if Bp != B or Hp != H:
        out = out[:B, :H]
    return out


def _make_case(key, batch, input_dim, hidden):
    k_x, k_w, k_b = jax.random.split(key, 3)
    x = jax.random.normal(k_x, (batch, input_dim), dtype=jnp.float32)
    # Mimic nn.Linear's uniform(-1/sqrt(fan_in), 1/sqrt(fan_in)) init.
    bound = 1.0 / jnp.sqrt(jnp.float32(input_dim))
    w = jax.random.uniform(k_w, (input_dim, hidden), dtype=jnp.float32,
                           minval=-bound, maxval=bound)
    b = jax.random.uniform(k_b, (hidden,), dtype=jnp.float32,
                           minval=-bound, maxval=bound)
    return x, w, b


def _check(x, w, b, atol=1e-4, rtol=1e-4):
    params = prepare_shared_layer(w, b)      # one-time padding (parameter init)
    out = shared_layer_fwd(params, x)
    jax.block_until_ready(out)
    ref = jnp.maximum(
        jnp.dot(x, w, precision=lax.Precision.HIGHEST) + b, 0.0
    )
    assert out.shape == ref.shape
    assert jnp.allclose(out, ref, atol=atol, rtol=rtol), (
        f"mismatch: max abs err = {jnp.max(jnp.abs(out - ref))}"
    )


if __name__ == "__main__":
    key = jax.random.PRNGKey(0)
    k1, k2, k3 = jax.random.split(key, 3)

    # 1) Tiny demo shape (8 x 32 x 32): takes the plain-XLA fallback path
    #    (pallas launch overhead would be 100% of the cost here).
    _check(*_make_case(k1, batch=8, input_dim=32, hidden=32))

    # 2) Kernel-sized shape (256 x 768 x 512): Pallas path, no x padding,
    #    K-axis accumulation (2 k-steps) and N split for v7x's 2nd TensorCore.
    _check(*_make_case(k2, batch=256, input_dim=768, hidden=512))

    # 3) Ragged shape (300 x 200 x 130): exercises M/K/N padding + output slice.
    _check(*_make_case(k3, batch=300, input_dim=200, hidden=130))

    print("KERNEL_OK")
</pallas_src>

<mosaic_0001>
module attributes {stable_mosaic.version = 11 : i64} {
  func.func @shared_layer_kernel(%arg0: i32, %arg1: i32, %arg2: i32, %arg3: memref<256x384xf32, #tpu.memory_space<vmem>>, %arg4: memref<384x256xf32, #tpu.memory_space<vmem>>, %arg5: memref<1x256xf32, #tpu.memory_space<vmem>>, %arg6: memref<256x256xf32, #tpu.memory_space<vmem>>) attributes {dimension_semantics = [#tpu.dimension_semantics<parallel>, #tpu.dimension_semantics<parallel>, #tpu.dimension_semantics<arbitrary>], iteration_bounds = array<i64: 1, 2, 2>, scalar_prefetch = 0 : i64, scratch_operands = 0 : i64, tpu.core_type = #tpu.core_type<tc>, window_params = [{transform_indices = @transform_0, window_bounds = array<i64: 256, 384>}, {transform_indices = @transform_1, window_bounds = array<i64: 384, 256>}, {transform_indices = @transform_2, window_bounds = array<i64: 1, 256>}, {transform_indices = @transform_3, window_bounds = array<i64: 256, 256>}]} {
    %c0_i32 = arith.constant 0 : i32
    %0 = arith.cmpi eq, %arg2, %c0_i32 : i32
    %1 = arith.extui %0 : i1 to i32
    %c0_i32_0 = arith.constant 0 : i32
    %2 = arith.cmpi ne, %1, %c0_i32_0 : i32
    scf.if %2 {
      %c0_9 = arith.constant 0 : index
      %c0_10 = arith.constant 0 : index
      %12 = vector.load %arg5[%c0_9, %c0_10] : memref<1x256xf32, #tpu.memory_space<vmem>>, vector<1x256xf32>
      %13 = vector.shape_cast %12 : vector<1x256xf32> to vector<1x256xf32>
      %14 = vector.broadcast %13 : vector<1x256xf32> to vector<256x256xf32>
      %c0_11 = arith.constant 0 : index
      %c0_12 = arith.constant 0 : index
      %15 = vector.load %arg6[%c0_11, %c0_12] : memref<256x256xf32, #tpu.memory_space<vmem>>, vector<256x256xf32>
      tpu.vector_store %arg6[%c0_11, %c0_12], %14 {strides = array<i32>} : memref<256x256xf32, #tpu.memory_space<vmem>>, vector<256x256xf32>,
    } else {
    }
    %c0 = arith.constant 0 : index
    %c0_1 = arith.constant 0 : index
    %3 = vector.load %arg6[%c0, %c0_1] : memref<256x256xf32, #tpu.memory_space<vmem>>, vector<256x256xf32>
    %c0_2 = arith.constant 0 : index
    %c0_3 = arith.constant 0 : index
    %4 = vector.load %arg3[%c0_2, %c0_3] : memref<256x384xf32, #tpu.memory_space<vmem>>, vector<256x384xf32>
    %c0_4 = arith.constant 0 : index
    %c0_5 = arith.constant 0 : index
    %5 = vector.load %arg4[%c0_4, %c0_5] : memref<384x256xf32, #tpu.memory_space<vmem>>, vector<384x256xf32>
    %cst = arith.constant dense<0.000000e+00> : vector<256x256xf32>
    %6 = tpu.matmul %4, %5, %cst {dimension_numbers = #tpu.dot_dimension_numbers<[1], [0], [0], [1], [0, 0, 1, 1], [], []>} : vector<256x384xf32>, vector<384x256xf32>, vector<256x256xf32> -> vector<256x256xf32>
    %7 = arith.addf %3, %6 : vector<256x256xf32>
    %c0_6 = arith.constant 0 : index
    %c0_7 = arith.constant 0 : index
    %8 = vector.load %arg6[%c0_6, %c0_7] : memref<256x256xf32, #tpu.memory_space<vmem>>, vector<256x256xf32>
    tpu.vector_store %arg6[%c0_6, %c0_7], %7 {strides = array<i32>} : memref<256x256xf32, #tpu.memory_space<vmem>>, vector<256x256xf32>,
    %c1_i32 = arith.constant 1 : i32
    %9 = arith.cmpi eq, %arg2, %c1_i32 : i32
    %10 = arith.extui %9 : i1 to i32
    %c0_i32_8 = arith.constant 0 : i32
    %11 = arith.cmpi ne, %10, %c0_i32_8 : i32
    scf.if %11 {
      %c0_9 = arith.constant 0 : index
      %c0_10 = arith.constant 0 : index
      %12 = vector.load %arg6[%c0_9, %c0_10] : memref<256x256xf32, #tpu.memory_space<vmem>>, vector<256x256xf32>
      %cst_11 = arith.constant 0.000000e+00 : f32
      %13 = vector.broadcast %cst_11 : f32 to vector<256x256xf32>
      %14 = arith.maximumf %12, %13 : vector<256x256xf32>
      %c0_12 = arith.constant 0 : index
      %c0_13 = arith.constant 0 : index
      %15 = vector.load %arg6[%c0_12, %c0_13] : memref<256x256xf32, #tpu.memory_space<vmem>>, vector<256x256xf32>
      tpu.vector_store %arg6[%c0_12, %c0_13], %14 {strides = array<i32>} : memref<256x256xf32, #tpu.memory_space<vmem>>, vector<256x256xf32>,
    } else {
    }
    return
  }
  func.func @transform_0(%arg0: i32, %arg1: i32, %arg2: i32) -> (i32, i32) {
    %c0_i32 = arith.constant 0 : i32
    return %arg0, %arg2 : i32, i32
  }
  func.func @transform_1(%arg0: i32, %arg1: i32, %arg2: i32) -> (i32, i32) {
    %c0_i32 = arith.constant 0 : i32
    return %arg2, %arg1 : i32, i32
  }
  func.func @transform_2(%arg0: i32, %arg1: i32, %arg2: i32) -> (i32, i32) {
    %c0_i32 = arith.constant 0 : i32
    %c0_i32_0 = arith.constant 0 : i32
    return %c0_i32, %arg1 : i32, i32
  }
  func.func @transform_3(%arg0: i32, %arg1: i32, %arg2: i32) -> (i32, i32) {
    %c0_i32 = arith.constant 0 : i32
    return %arg0, %arg1 : i32, i32
  }
}

</mosaic_0001>

<llo_original>
// kernel: tpu_custom_call.1
$region0: #{tpu_custom_call.1}
  #allocation0 [shape = 'u32[]', space=smem, size = 0x4, offset = 0x4, fixed_abs, tag = 'smem constant byte address 0x4 - core index']
  #allocation1 [shape = 'u32[72,128]{1,0:T(1,128)}', space=vmem, size = 0x9000, scoped, tag = 'internal scratch']
  %s0 = inlined_call_operand.hbm [shape: f32[256,768], index: 0, kind: input, shape index: {}]
  %s1 = inlined_call_operand.hbm [shape: f32[768,512], index: 1, kind: input, shape index: {}]
  %s2 = inlined_call_operand.hbm [shape: f32[1,512], index: 2, kind: input, shape index: {}]
  %s3 = inlined_call_operand.hbm [shape: f32[256,512], index: 3, kind: output, shape index: {}]
  %s4 = sld [smem:[#allocation0]]
  $region65: #{tpu_custom_call.1} parent=0
    _
  %s6 = ssub.s32 1, %s4
  %s7 = scalar_select 0, %s6, %s4
  $region1: #{tpu_custom_call.1} parent=0
    #allocation2 [shape = 'u8[786432]{0}', space=vmem, size = 0xc0000, scoped, tag = 'input window, operand 0']
    #allocation3 [shape = 's32[2]{0}', space=sflag, size = 0x8, scoped, tag = 'scoped memory for tpu_custom_call.1']
    #allocation4 [shape = 's32[2]{0}', space=sflag, size = 0x8, scoped, tag = 'scoped memory for tpu_custom_call.1']
    #allocation5 [shape = 'u8[786432]{0}', space=vmem, size = 0xc0000, scoped, tag = 'input window, operand 1']
    #allocation6 [shape = 's32[2]{0}', space=sflag, size = 0x8, scoped, tag = 'scoped memory for tpu_custom_call.1']
    #allocation7 [shape = 'u8[2048]{0}', space=vmem, size = 0x800, scoped, tag = 'input window, operand 2']
    #allocation8 [shape = 'u8[524288]{0}', space=vmem, size = 0x80000, scoped, tag = 'output window, operand 0']
    %8 = vsyncpa [#allocation3], 0
    %s9 = scalar_lea.sflag [#allocation3], 1
    %10 = vsyncpa %s9, 0
    %11 = vsyncpa [#allocation6], 0
    %s12 = scalar_lea.sflag [#allocation6], 1
    %13 = vsyncpa %s12, 0
    %14 = vsyncpa [#allocation4], 0
    %s15 = scalar_lea.sflag [#allocation4], 1
    %16 = vsyncpa %s15, 0
    loop: start=0, step=1, limit=6
    $region2: #{tpu_custom_call.1} parent=1 // loop_pre_header
      _
    $region3: #{tpu_custom_call.1} parent=1 // loop_header
      %s18 = sphi 0, %s22
      %p19 = scmp.ge.s32.totalorder %s18, 6
      %s25 = sphi 0, %s44
      %s26 = sphi 0, %s40
      %s27 = sphi 0, %s36
      %s28 = sphi 0, %s25
      %s29 = sphi 0, %s26
      %s30 = sphi 0, %s27
      %s31 = sphi 0, %s28
      %s32 = sphi 0, %s29
      %s33 = sphi 0, %s30
      %s49 = sphi 0, %s51
      %s52 = sphi 0, %s49
      %s53 = sphi 0, %s52
      %s69 = sphi 0, %s53
      %s77 = sphi 0, %s79
      %s80 = sphi 0, %s77
      %s81 = sphi 0, %s80
      %s97 = sphi 0, %s81
      %s103 = sphi 0, %s105
      %s106 = sphi 0, %s103
      %s107 = sphi 0, %s106
      %s123 = sphi 0, %s107
      %s131 = sphi 0, %s133
      %s134 = sphi 0, %s131
      %s135 = sphi 0, %s134
      %s151 = sphi 0, %s135
    $region4: #{tpu_custom_call.1} parent=1 // loop_header_branch
      %21 = sbr.rel (%p19) target = $region8
    $region5: #{tpu_custom_call.1} parent=1 // loop_body
      %s23 = ssub.s32 %s18, 1
      %s24 = ssub.s32 %s18, 2
      %s34 = sadd.s32 1, %s27
      %p35 = scmp.ge.s32.totalorder %s34, 2
      %s36 = scalar_select %p35, 0, %s34
      %s37 = sadd.s32 1, %s26
      %s38 = scalar_select %p35, %s37, %s26
      %p39 = scmp.ge.s32.totalorder %s38, 2
      %s40 = scalar_select %p39, 0, %s38
      %s41 = sadd.s32 1, %s25
      %s42 = scalar_select %p39, %s41, %s25
      %p43 = scmp.ge.s32.totalorder %s42, 1
      %s44 = scalar_select %p43, 0, %s42
      %s45 = ssub.s32 %s25, %s44
      %s46 = ssub.s32 %s27, %s36
      %s47 = sor.u32 %s45, %s46
      %p48 = scmp.eq.s32.totalorder %s47, 0
      %s50 = sadd.s32 %s49, 1
      %s51 = scalar_select %p48, %s49, %s50
      %p54 = pneg %p48
      %p55 = scmp.eq.s32.totalorder %s18, 3
      %p56 = por %p54, %p55
      %p57 = scmp.ne.s32.totalorder %s49, %s52
      %p58 = scmp.eq.s32.totalorder %s18, 0
      %p59 = por %p57, %p58
      %p60 = scmp.ne.s32.totalorder %s49, %s52
      %p61 = scmp.eq.s32.totalorder %s23, 3
      %p62 = por %p60, %p61
      %p63 = scmp.ne.s32.totalorder %s52, %s53
      %p64 = scmp.eq.s32.totalorder %s23, 0
      %p65 = por %p63, %p64
      %p66 = scmp.ne.s32.totalorder %s52, %s53
      %p67 = scmp.eq.s32.totalorder %s24, 3
      %p68 = por %p66, %p67
      %p70 = scmp.ne.s32.totalorder %s53, %s69
      %p71 = scmp.eq.s32.totalorder %s24, 0
      %p72 = por %p70, %p71
      %s73 = ssub.s32 %s27, %s36
      %s74 = ssub.s32 %s26, %s40
      %s75 = sor.u32 %s73, %s74
      %p76 = scmp.eq.s32.totalorder %s75, 0
      %s78 = sadd.s32 %s77, 1
      %s79 = scalar_select %p76, %s77, %s78
      %p82 = pneg %p76
      %p83 = scmp.eq.s32.totalorder %s18, 3
      %p84 = por %p82, %p83
      %p85 = scmp.ne.s32.totalorder %s77, %s80
      %p86 = scmp.eq.s32.totalorder %s18, 0
      %p87 = por %p85, %p86
      %p88 = scmp.ne.s32.totalorder %s77, %s80
      %p89 = scmp.eq.s32.totalorder %s23, 3
      %p90 = por %p88, %p89
      %p91 = scmp.ne.s32.totalorder %s80, %s81
      %p92 = scmp.eq.s32.totalorder %s23, 0
      %p93 = por %p91, %p92
      %p94 = scmp.ne.s32.totalorder %s80, %s81
      %p95 = scmp.eq.s32.totalorder %s24, 3
      %p96 = por %p94, %p95
      %p98 = scmp.ne.s32.totalorder %s81, %s97
      %p99 = scmp.eq.s32.totalorder %s24, 0
      %p100 = por %p98, %p99
      %s101 = ssub.s32 %s26, %s40
      %p102 = scmp.eq.s32.totalorder %s101, 0
      %s104 = sadd.s32 %s103, 1
      %s105 = scalar_select %p102, %s103, %s104
      %p108 = pneg %p102
      %p109 = scmp.eq.s32.totalorder %s18, 3
      %p110 = por %p108, %p109
      %p111 = scmp.ne.s32.totalorder %s103, %s106
      %p112 = scmp.eq.s32.totalorder %s18, 0
      %p113 = por %p111, %p112
      %p114 = scmp.ne.s32.totalorder %s103, %s106
      %p115 = scmp.eq.s32.totalorder %s23, 3
      %p116 = por %p114, %p115
      %p117 = scmp.ne.s32.totalorder %s106, %s107
      %p118 = scmp.eq.s32.totalorder %s23, 0
      %p119 = por %p117, %p118
      %p120 = scmp.ne.s32.totalorder %s106, %s107
      %p121 = scmp.eq.s32.totalorder %s24, 3
      %p122 = por %p120, %p121
      %p124 = scmp.ne.s32.totalorder %s107, %s123
      %p125 = scmp.eq.s32.totalorder %s24, 0
      %p126 = por %p124, %p125
      %s127 = ssub.s32 %s25, %s44
      %s128 = ssub.s32 %s26, %s40
      %s129 = sor.u32 %s127, %s128
      %p130 = scmp.eq.s32.totalorder %s129, 0
      %s132 = sadd.s32 %s131, 1
      %s133 = scalar_select %p130, %s131, %s132
      %p136 = pneg %p130
      %p137 = scmp.eq.s32.totalorder %s18, 3
      %p138 = por %p136, %p137
      %p139 = scmp.ne.s32.totalorder %s131, %s134
      %p140 = scmp.eq.s32.totalorder %s18, 0
      %p141 = por %p139, %p140
      %p142 = scmp.ne.s32.totalorder %s131, %s134
      %p143 = scmp.eq.s32.totalorder %s23, 3
      %p144 = por %p142, %p143
      %p145 = scmp.ne.s32.totalorder %s134, %s135
      %p146 = scmp.eq.s32.totalorder %s23, 0
      %p147 = por %p145, %p146
      %p148 = scmp.ne.s32.totalorder %s134, %s135
      %p149 = scmp.eq.s32.totalorder %s24, 3
      %p150 = por %p148, %p149
      %p152 = scmp.ne.s32.totalorder %s135, %s151
      %p153 = scmp.eq.s32.totalorder %s24, 0
      %p154 = por %p152, %p153
      %p155 = scmp.le.s32.totalorder 1, %s18
      %p156 = scmp.lt.s32.totalorder %s18, 5
      %p157 = pnand %p155, %p156
      %p158 = pneg %p157
      // Predicated region
      $region9: #{tpu_custom_call.1} parent=5 // pred_check
        _
      $region10: #{tpu_custom_call.1} parent=5 // pred_check_branch
        %160 = sbr.rel (%p157) target = $region12
      $region11: #{tpu_custom_call.1} parent=5 // pred_region
        %s161 = ssub.s32 %s18, 1
      $region12: #{tpu_custom_call.1} parent=5 // pred_fallthru
        _
      %p162 = scmp.lt.s32.totalorder %s18, 4
      // Predicated region
      $region13: #{tpu_custom_call.1} parent=5 // pred_check
        %p163 = pneg %p162
      $region14: #{tpu_custom_call.1} parent=5 // pred_check_branch
        %165 = sbr.rel (%p163) target = $region16
      $region15: #{tpu_custom_call.1} parent=5 // pred_region
        // Predicated region
        $region17: #{tpu_custom_call.1} parent=15 // pred_check
          %p166 = pneg %p59
        $region18: #{tpu_custom_call.1} parent=15 // pred_check_branch
          %168 = sbr.rel (%p166) target = $region20
        $region19: #{tpu_custom_call.1} parent=15 // pred_region
          %s169 = sand.u32 %s49, 1
          %s170 = scalar_lea.sflag [#allocation3], %s169
          %s171 = sand.u32 %s49, 1
          %s172 = smul.addr %s171, 768
          %s173 = scalar_lea.vmem [#allocation2], %s172
          %s174 = smul.u32 32, %s25
          %s175 = smul.u32 3, %s27
          %177 = vsyncadd %s170, 0
          %s178 = smul.addr %s174, 6
          %s179 = sadd.s32 %s175, %s178
          %s180 = smul.addr %s179, 8
          %s181 = scalar_lea.hbm %s0, %s180
          %s182 = sshll.u32 %s181, 4
          %s183 = int_to_ptr.hbm [resolvable:$true] %s182
          %s184 = sshll.u32 %s173, 4
          %s185 = int_to_ptr.vmem [resolvable:$true] %s184
          %190 = dma.hbm_to_vmem [thread:$0]  %s183, 12288, %s185, %s170, 768, 384, 24
        $region20: #{tpu_custom_call.1} parent=15 // pred_fallthru
          _
        // Predicated region
        $region21: #{tpu_custom_call.1} parent=15 // pred_check
          %p191 = pneg %p87
        $region22: #{tpu_custom_call.1} parent=15 // pred_check_branch
          %193 = sbr.rel (%p191) target = $region24
        $region23: #{tpu_custom_call.1} parent=15 // pred_region
          %s194 = sand.u32 %s18, 1
          %s195 = scalar_lea.sflag [#allocation6], %s194
          %s196 = sand.u32 %s77, 1
          %s197 = smul.addr %s196, 768
          %s198 = scalar_lea.vmem [#allocation5], %s197
          %s199 = smul.u32 48, %s27
          %s200 = smul.u32 2, %s26
          %202 = vsyncadd %s195, 0
          %s203 = smul.addr %s199, 4
          %s204 = sadd.s32 %s200, %s203
          %s205 = smul.addr %s204, 8
          %s206 = scalar_lea.hbm %s1, %s205
          %s207 = sshll.u32 %s206, 4
          %s208 = int_to_ptr.hbm [resolvable:$true] %s207
          %s209 = sshll.u32 %s198, 4
          %s210 = int_to_ptr.vmem [resolvable:$true] %s209
          %215 = dma.hbm_to_vmem [thread:$0]  %s208, 12288, %s210, %s195, 512, 256, 16
        $region24: #{tpu_custom_call.1} parent=15 // pred_fallthru
          _
        // Predicated region
        $region25: #{tpu_custom_call.1} parent=15 // pred_check
          %p216 = pneg %p113
        $region26: #{tpu_custom_call.1} parent=15 // pred_check_branch
          %218 = sbr.rel (%p216) target = $region28
        $region27: #{tpu_custom_call.1} parent=15 // pred_region
          %s219 = sand.u32 %s18, 1
          %s220 = scalar_lea.sflag [#allocation6], %s219
          %s221 = sand.u32 %s103, 1
          %s222 = smul.addr %s221, 2
          %s223 = scalar_lea.vmem [#allocation7], %s222
          %s224 = smul.u32 2, %s26
          %226 = vsyncadd %s220, 0
          %s227 = scalar_lea.hbm %s2, %s224
          %s229 = sshll.u32 %s227, 4
          %s230 = int_to_ptr.hbm [resolvable:$true] %s229
          %s231 = sshll.u32 %s223, 4
          %s232 = int_to_ptr.vmem [resolvable:$true] %s231
          %234 = dma.hbm_to_vmem [thread:$0]  %s230, 32, %s232, %s220
        $region28: #{tpu_custom_call.1} parent=15 // pred_fallthru
          _
      $region16: #{tpu_custom_call.1} parent=5 // pred_fallthru
        _
      %p235 = scmp.le.s32.totalorder 1, %s18
      %p236 = scmp.lt.s32.totalorder %s18, 5
      %p237 = pnand %p235, %p236
      %p238 = pneg %p237
      // Predicated region
      $region29: #{tpu_custom_call.1} parent=5 // pred_check
        _
      $region30: #{tpu_custom_call.1} parent=5 // pred_check_branch
        %240 = sbr.rel (%p237) target = $region32
      $region31: #{tpu_custom_call.1} parent=5 // pred_region
        %s241 = ssub.s32 %s18, 1
        %s242 = sand.u32 %s52, 1
        %s243 = scalar_lea.sflag [#allocation3], %s242
        %s244 = sand.u32 %s52, 1
        %s245 = smul.addr %s244, 768
        %s246 = scalar_lea.vmem [#allocation2], %s245
        // Predicated region
        $region33: #{tpu_custom_call.1} parent=31 // pred_check
          %p247 = pneg %p65
        $region34: #{tpu_custom_call.1} parent=31 // pred_check_branch
          %249 = sbr.rel (%p247) target = $region36
        $region35: #{tpu_custom_call.1} parent=31 // pred_region
          %251 = dma.done %s243, 12288
        $region36: #{tpu_custom_call.1} parent=31 // pred_fallthru
          _
        %s252 = sand.u32 %s23, 1
        %s253 = scalar_lea.sflag [#allocation6], %s252
        %s254 = sand.u32 %s80, 1
        %s255 = smul.addr %s254, 768
        %s256 = scalar_lea.vmem [#allocation5], %s255
        // Predicated region
        $region37: #{tpu_custom_call.1} parent=31 // pred_check
          %p257 = pneg %p93
        $region38: #{tpu_custom_call.1} parent=31 // pred_check_branch
          %259 = sbr.rel (%p257) target = $region40
        $region39: #{tpu_custom_call.1} parent=31 // pred_region
          %261 = dma.done %s253, 12288
        $region40: #{tpu_custom_call.1} parent=31 // pred_fallthru
          _
        %s262 = sand.u32 %s23, 1
        %s263 = scalar_lea.sflag [#allocation6], %s262
        %s264 = sand.u32 %s106, 1
        %s265 = smul.addr %s264, 2
        %s266 = scalar_lea.vmem [#allocation7], %s265
        // Predicated region
        $region41: #{tpu_custom_call.1} parent=31 // pred_check
          %p267 = pneg %p119
        $region42: #{tpu_custom_call.1} parent=31 // pred_check_branch
          %269 = sbr.rel (%p267) target = $region44
        $region43: #{tpu_custom_call.1} parent=31 // pred_region
          %271 = dma.done %s263, 32
        $region44: #{tpu_custom_call.1} parent=31 // pred_fallthru
          _
        %s272 = sand.u32 %s52, 1
        %s273 = scalar_lea.sflag [#allocation3], %s272
        %s274 = sand.u32 %s52, 1
        %s275 = smul.addr %s274, 768
        %s276 = scalar_lea.vmem [#allocation2], %s275
        %p277 = pneg %p65
        %p278 = pneg %p62
        %s279 = sand.u32 %s23, 1
        %s280 = scalar_lea.sflag [#allocation6], %s279
        %s281 = sand.u32 %s80, 1
        %s282 = smul.addr %s281, 768
        %s283 = scalar_lea.vmem [#allocation5], %s282
        %p284 = pneg %p93
        %p285 = pneg %p90
        %s286 = sand.u32 %s23, 1
        %s287 = scalar_lea.sflag [#allocation6], %s286
        %s288 = sand.u32 %s106, 1
        %s289 = smul.addr %s288, 2
        %s290 = scalar_lea.vmem [#allocation7], %s289
        %p291 = pneg %p119
        %p292 = pneg %p116
        %p293 = pneg %p147
        %p294 = pneg %p144
        %s295 = sand.u32 %s134, 1
        %s296 = scalar_lea.sflag [#allocation4], %s295
        %s297 = sand.u32 %s134, 1
        %s298 = smul.addr %s297, 512
        %s299 = scalar_lea.vmem [#allocation8], %s298
        %s300 = smul.u32 32, %s28
        %s301 = smul.u32 3, %s30
        %s302 = smul.u32 48, %s30
        %s303 = smul.u32 2, %s29
        %s304 = smul.u32 2, %s29
        %s305 = smul.u32 32, %s28
        %s306 = smul.u32 2, %s29
        %p307 = scmp.eq.s32.totalorder %s30, 0
        // Predicated region
        $region45: #{tpu_custom_call.1} parent=31 // pred_check
          %p308 = pneg %p307
        $region46: #{tpu_custom_call.1} parent=31 // pred_check_branch
          %310 = sbr.rel (%p308) target = $region48
        $region47: #{tpu_custom_call.1} parent=31 // pred_region
          %v311 = vld [vmem:[%s266] sm:$0x3]
          %v313 = vperm.slane %v311, 0
          %v314 = vperm.slane %v311, 1
          %317 = vst [vmem:[%s299] sm:$0xff] %v313
          %318 = vst [vmem:[%s299 + $0x8] sm:$0xff] %v314
          %319 = vst [vmem:[%s299 + $0x10] sm:$0xff] %v313
          %320 = vst [vmem:[%s299 + $0x18] sm:$0xff] %v314
          %321 = vst [vmem:[%s299 + $0x20] sm:$0xff] %v313
          %322 = vst [vmem:[%s299 + $0x28] sm:$0xff] %v314
          %323 = vst [vmem:[%s299 + $0x30] sm:$0xff] %v313
          %324 = vst [vmem:[%s299 + $0x38] sm:$0xff] %v314
          %325 = vst [vmem:[%s299 + $0x40] sm:$0xff] %v313
          %326 = vst [vmem:[%s299 + $0x48] sm:$0xff] %v314
          %327 = vst [vmem:[%s299 + $0x50] sm:$0xff] %v313
          %328 = vst [vmem:[%s299 + $0x58] sm:$0xff] %v314
          %329 = vst [vmem:[%s299 + $0x60] sm:$0xff] %v313
          %330 = vst [vmem:[%s299 + $0x68] sm:$0xff] %v314
          %331 = vst [vmem:[%s299 + $0x70] sm:$0xff] %v313
          %332 = vst [vmem:[%s299 + $0x78] sm:$0xff] %v314
          %333 = vst [vmem:[%s299 + $0x80] sm:$0xff] %v313
          %334 = vst [vmem:[%s299 + $0x88] sm:$0xff] %v314
          %335 = vst [vmem:[%s299 + $0x90] sm:$0xff] %v313
          %336 = vst [vmem:[%s299 + $0x98] sm:$0xff] %v314
          %337 = vst [vmem:[%s299 + $0xa0] sm:$0xff] %v313
          %338 = vst [vmem:[%s299 + $0xa8] sm:$0xff] %v314
          %339 = vst [vmem:[%s299 + $0xb0] sm:$0xff] %v313
          %340 = vst [vmem:[%s299 + $0xb8] sm:$0xff] %v314
          %341 = vst [vmem:[%s299 + $0xc0] sm:$0xff] %v313
          %342 = vst [vmem:[%s299 + $0xc8] sm:$0xff] %v314
          %343 = vst [vmem:[%s299 + $0xd0] sm:$0xff] %v313
          %344 = vst [vmem:[%s299 + $0xd8] sm:$0xff] %v314
          %345 = vst [vmem:[%s299 + $0xe0] sm:$0xff] %v313
          %346 = vst [vmem:[%s299 + $0xe8] sm:$0xff] %v314
          %347 = vst [vmem:[%s299 + $0xf0] sm:$0xff] %v313
          %348 = vst [vmem:[%s299 + $0xf8] sm:$0xff] %v314
          %349 = vst [vmem:[%s299 + $0x100] sm:$0xff] %v313
          %350 = vst [vmem:[%s299 + $0x108] sm:$0xff] %v314
          %351 = vst [vmem:[%s299 + $0x110] sm:$0xff] %v313
          %352 = vst [vmem:[%s299 + $0x118] sm:$0xff] %v314
          %353 = vst [vmem:[%s299 + $0x120] sm:$0xff] %v313
          %354 = vst [vmem:[%s299 + $0x128] sm:$0xff] %v314
          %355 = vst [vmem:[%s299 + $0x130] sm:$0xff] %v313
          %356 = vst [vmem:[%s299 + $0x138] sm:$0xff] %v314
          %357 = vst [vmem:[%s299 + $0x140] sm:$0xff] %v313
          %358 = vst [vmem:[%s299 + $0x148] sm:$0xff] %v314
          %359 = vst [vmem:[%s299 + $0x150] sm:$0xff] %v313
          %360 = vst [vmem:[%s299 + $0x158] sm:$0xff] %v314
          %361 = vst [vmem:[%s299 + $0x160] sm:$0xff] %v313
          %362 = vst [vmem:[%s299 + $0x168] sm:$0xff] %v314
          %363 = vst [vmem:[%s299 + $0x170] sm:$0xff] %v313
          %364 = vst [vmem:[%s299 + $0x178] sm:$0xff] %v314
          %365 = vst [vmem:[%s299 + $0x180] sm:$0xff] %v313
          %366 = vst [vmem:[%s299 + $0x188] sm:$0xff] %v314
          %367 = vst [vmem:[%s299 + $0x190] sm:$0xff] %v313
          %368 = vst [vmem:[%s299 + $0x198] sm:$0xff] %v314
          %369 = vst [vmem:[%s299 + $0x1a0] sm:$0xff] %v313
          %370 = vst [vmem:[%s299 + $0x1a8] sm:$0xff] %v314
          %371 = vst [vmem:[%s299 + $0x1b0] sm:$0xff] %v313
          %372 = vst [vmem:[%s299 + $0x1b8] sm:$0xff] %v314
          %373 = vst [vmem:[%s299 + $0x1c0] sm:$0xff] %v313
          %374 = vst [vmem:[%s299 + $0x1c8] sm:$0xff] %v314
          %375 = vst [vmem:[%s299 + $0x1d0] sm:$0xff] %v313
          %376 = vst [vmem:[%s299 + $0x1d8] sm:$0xff] %v314
          %377 = vst [vmem:[%s299 + $0x1e0] sm:$0xff] %v313
          %378 = vst [vmem:[%s299 + $0x1e8] sm:$0xff] %v314
          %379 = vst [vmem:[%s299 + $0x1f0] sm:$0xff] %v313
          %380 = vst [vmem:[%s299 + $0x1f8] sm:$0xff] %v314
        $region48: #{tpu_custom_call.1} parent=31 // pred_fallthru
          _
        %v381 = vld [vmem:[%s299] sm:$0xff]
        %v382 = vld [vmem:[%s299 + $0x8] sm:$0xff]
        %v383 = vld [vmem:[%s299 + $0x10] sm:$0xff]
        %v384 = vld [vmem:[%s299 + $0x18] sm:$0xff]
        %v385 = vld [vmem:[%s299 + $0x20] sm:$0xff]
        %v386 = vld [vmem:[%s299 + $0x28] sm:$0xff]
        %v387 = vld [vmem:[%s299 + $0x30] sm:$0xff]
        %v388 = vld [vmem:[%s299 + $0x38] sm:$0xff]
        %v389 = vld [vmem:[%s299 + $0x40] sm:$0xff]
        %v390 = vld [vmem:[%s299 + $0x48] sm:$0xff]
        %v391 = vld [vmem:[%s299 + $0x50] sm:$0xff]
        %v392 = vld [vmem:[%s299 + $0x58] sm:$0xff]
        %v393 = vld [vmem:[%s299 + $0x60] sm:$0xff]
        %v394 = vld [vmem:[%s299 + $0x68] sm:$0xff]
        %v395 = vld [vmem:[%s299 + $0x70] sm:$0xff]
        %v396 = vld [vmem:[%s299 + $0x78] sm:$0xff]
        %v397 = vld [vmem:[%s299 + $0x80] sm:$0xff]
        %v398 = vld [vmem:[%s299 + $0x88] sm:$0xff]
        %v399 = vld [vmem:[%s299 + $0x90] sm:$0xff]
        %v400 = vld [vmem:[%s299 + $0x98] sm:$0xff]
        %v401 = vld [vmem:[%s299 + $0xa0] sm:$0xff]
        %v402 = vld [vmem:[%s299 + $0xa8] sm:$0xff]
        %v403 = vld [vmem:[%s299 + $0xb0] sm:$0xff]
        %v404 = vld [vmem:[%s299 + $0xb8] sm:$0xff]
        %v405 = vld [vmem:[%s299 + $0xc0] sm:$0xff]
        %v406 = vld [vmem:[%s299 + $0xc8] sm:$0xff]
        %v407 = vld [vmem:[%s299 + $0xd0] sm:$0xff]
        %v408 = vld [vmem:[%s299 + $0xd8] sm:$0xff]
        %v409 = vld [vmem:[%s299 + $0xe0] sm:$0xff]
        %v410 = vld [vmem:[%s299 + $0xe8] sm:$0xff]
        %v411 = vld [vmem:[%s299 + $0xf0] sm:$0xff]
        %v412 = vld [vmem:[%s299 + $0xf8] sm:$0xff]
        %v413 = vld [vmem:[%s299 + $0x100] sm:$0xff]
        %v414 = vld [vmem:[%s299 + $0x108] sm:$0xff]
        %v415 = vld [vmem:[%s299 + $0x110] sm:$0xff]
        %v416 = vld [vmem:[%s299 + $0x118] sm:$0xff]
        %v417 = vld [vmem:[%s299 + $0x120] sm:$0xff]
        %v418 = vld [vmem:[%s299 + $0x128] sm:$0xff]
        %v419 = vld [vmem:[%s299 + $0x130] sm:$0xff]
        %v420 = vld [vmem:[%s299 + $0x138] sm:$0xff]
        %v421 = vld [vmem:[%s299 + $0x140] sm:$0xff]
        %v422 = vld [vmem:[%s299 + $0x148] sm:$0xff]
        %v423 = vld [vmem:[%s299 + $0x150] sm:$0xff]
        %v424 = vld [vmem:[%s299 + $0x158] sm:$0xff]
        %v425 = vld [vmem:[%s299 + $0x160] sm:$0xff]
        %v426 = vld [vmem:[%s299 + $0x168] sm:$0xff]
        %v427 = vld [vmem:[%s299 + $0x170] sm:$0xff]
        %v428 = vld [vmem:[%s299 + $0x178] sm:$0xff]
        %v429 = vld [vmem:[%s299 + $0x180] sm:$0xff]
        %v430 = vld [vmem:[%s299 + $0x188] sm:$0xff]
        %v431 = vld [vmem:[%s299 + $0x190] sm:$0xff]
        %v432 = vld [vmem:[%s299 + $0x198] sm:$0xff]
        %v433 = vld [vmem:[%s299 + $0x1a0] sm:$0xff]
        %v434 = vld [vmem:[%s299 + $0x1a8] sm:$0xff]
        %v435 = vld [vmem:[%s299 + $0x1b0] sm:$0xff]
        %v436 = vld [vmem:[%s299 + $0x1b8] sm:$0xff]
        %v437 = vld [vmem:[%s299 + $0x1c0] sm:$0xff]
        %v438 = vld [vmem:[%s299 + $0x1c8] sm:$0xff]
        %v439 = vld [vmem:[%s299 + $0x1d0] sm:$0xff]
        %v440 = vld [vmem:[%s299 + $0x1d8] sm:$0xff]
        %v441 = vld [vmem:[%s299 + $0x1e0] sm:$0xff]
        %v442 = vld [vmem:[%s299 + $0x1e8] sm:$0xff]
        %v443 = vld [vmem:[%s299 + $0x1f0] sm:$0xff]
        %v444 = vld [vmem:[%s299 + $0x1f8] sm:$0xff]
        %v445 = vld [vmem:[%s246] sm:$0xff]
        %v446 = vld [vmem:[%s246 + $0x8] sm:$0xff]
        %v447 = vld [vmem:[%s246 + $0x10] sm:$0xff]
        %v448 = vld [vmem:[%s246 + $0x18] sm:$0xff]
        %v449 = vld [vmem:[%s246 + $0x20] sm:$0xff]
        %v450 = vld [vmem:[%s246 + $0x28] sm:$0xff]
        %v451 = vld [vmem:[%s246 + $0x30] sm:$0xff]
        %v452 = vld [vmem:[%s246 + $0x38] sm:$0xff]
        %v453 = vld [vmem:[%s246 + $0x40] sm:$0xff]
        %v454 = vld [vmem:[%s246 + $0x48] sm:$0xff]
        %v455 = vld [vmem:[%s246 + $0x50] sm:$0xff]
        %v456 = vld [vmem:[%s246 + $0x58] sm:$0xff]
        %v457 = vld [vmem:[%s246 + $0x60] sm:$0xff]
        %v458 = vld [vmem:[%s246 + $0x68] sm:$0xff]
        %v459 = vld [vmem:[%s246 + $0x70] sm:$0xff]
        %v460 = vld [vmem:[%s246 + $0x78] sm:$0xff]
        %v461 = vld [vmem:[%s246 + $0x80] sm:$0xff]
        %v462 = vld [vmem:[%s246 + $0x88] sm:$0xff]
        %v463 = vld [vmem:[%s246 + $0x90] sm:$0xff]
        %v464 = vld [vmem:[%s246 + $0x98] sm:$0xff]
        %v465 = vld [vmem:[%s246 + $0xa0] sm:$0xff]
        %v466 = vld [vmem:[%s246 + $0xa8] sm:$0xff]
        %v467 = vld [vmem:[%s246 + $0xb0] sm:$0xff]
        %v468 = vld [vmem:[%s246 + $0xb8] sm:$0xff]
        %v469 = vld [vmem:[%s246 + $0xc0] sm:$0xff]
        %v470 = vld [vmem:[%s246 + $0xc8] sm:$0xff]
        %v471 = vld [vmem:[%s246 + $0xd0] sm:$0xff]
        %v472 = vld [vmem:[%s246 + $0xd8] sm:$0xff]
        %v473 = vld [vmem:[%s246 + $0xe0] sm:$0xff]
        %v474 = vld [vmem:[%s246 + $0xe8] sm:$0xff]
        %v475 = vld [vmem:[%s246 + $0xf0] sm:$0xff]
        %v476 = vld [vmem:[%s246 + $0xf8] sm:$0xff]
        %v477 = vld [vmem:[%s246 + $0x100] sm:$0xff]
        %v478 = vld [vmem:[%s246 + $0x108] sm:$0xff]
        %v479 = vld [vmem:[%s246 + $0x110] sm:$0xff]
        %v480 = vld [vmem:[%s246 + $0x118] sm:$0xff]
        %v481 = vld [vmem:[%s246 + $0x120] sm:$0xff]
        %v482 = vld [vmem:[%s246 + $0x128] sm:$0xff]
        %v483 = vld [vmem:[%s246 + $0x130] sm:$0xff]
        %v484 = vld [vmem:[%s246 + $0x138] sm:$0xff]
        %v485 = vld [vmem:[%s246 + $0x140] sm:$0xff]
        %v486 = vld [vmem:[%s246 + $0x148] sm:$0xff]
        %v487 = vld [vmem:[%s246 + $0x150] sm:$0xff]
        %v488 = vld [vmem:[%s246 + $0x158] sm:$0xff]
        %v489 = vld [vmem:[%s246 + $0x160] sm:$0xff]
        %v490 = vld [vmem:[%s246 + $0x168] sm:$0xff]
        %v491 = vld [vmem:[%s246 + $0x170] sm:$0xff]
        %v492 = vld [vmem:[%s246 + $0x178] sm:$0xff]
        %v493 = vld [vmem:[%s246 + $0x180] sm:$0xff]
        %v494 = vld [vmem:[%s246 + $0x188] sm:$0xff]
        %v495 = vld [vmem:[%s246 + $0x190] sm:$0xff]
        %v496 = vld [vmem:[%s246 + $0x198] sm:$0xff]
        %v497 = vld [vmem:[%s246 + $0x1a0] sm:$0xff]
        %v498 = vld [vmem:[%s246 + $0x1a8] sm:$0xff]
        %v499 = vld [vmem:[%s246 + $0x1b0] sm:$0xff]
        %v500 = vld [vmem:[%s246 + $0x1b8] sm:$0xff]
        %v501 = vld [vmem:[%s246 + $0x1c0] sm:$0xff]
        %v502 = vld [vmem:[%s246 + $0x1c8] sm:$0xff]
        %v503 = vld [vmem:[%s246 + $0x1d0] sm:$0xff]
        %v504 = vld [vmem:[%s246 + $0x1d8] sm:$0xff]
        %v505 = vld [vmem:[%s246 + $0x1e0] sm:$0xff]
        %v506 = vld [vmem:[%s246 + $0x1e8] sm:$0xff]
        %v507 = vld [vmem:[%s246 + $0x1f0] sm:$0xff]
        %v508 = vld [vmem:[%s246 + $0x1f8] sm:$0xff]
        %v509 = vld [vmem:[%s246 + $0x200] sm:$0xff]
        %v510 = vld [vmem:[%s246 + $0x208] sm:$0xff]
        %v511 = vld [vmem:[%s246 + $0x210] sm:$0xff]
        %v512 = vld [vmem:[%s246 + $0x218] sm:$0xff]
        %v513 = vld [vmem:[%s246 + $0x220] sm:$0xff]
        %v514 = vld [vmem:[%s246 + $0x228] sm:$0xff]
        %v515 = vld [vmem:[%s246 + $0x230] sm:$0xff]
        %v516 = vld [vmem:[%s246 + $0x238] sm:$0xff]
        %v517 = vld [vmem:[%s246 + $0x240] sm:$0xff]
        %v518 = vld [vmem:[%s246 + $0x248] sm:$0xff]
        %v519 = vld [vmem:[%s246 + $0x250] sm:$0xff]
        %v520 = vld [vmem:[%s246 + $0x258] sm:$0xff]
        %v521 = vld [vmem:[%s246 + $0x260] sm:$0xff]
        %v522 = vld [vmem:[%s246 + $0x268] sm:$0xff]
        %v523 = vld [vmem:[%s246 + $0x270] sm:$0xff]
        %v524 = vld [vmem:[%s246 + $0x278] sm:$0xff]
        %v525 = vld [vmem:[%s246 + $0x280] sm:$0xff]
        %v526 = vld [vmem:[%s246 + $0x288] sm:$0xff]
        %v527 = vld [vmem:[%s246 + $0x290] sm:$0xff]
        %v528 = vld [vmem:[%s246 + $0x298] sm:$0xff]
        %v529 = vld [vmem:[%s246 + $0x2a0] sm:$0xff]
        %v530 = vld [vmem:[%s246 + $0x2a8] sm:$0xff]
        %v531 = vld [vmem:[%s246 + $0x2b0] sm:$0xff]
        %v532 = vld [vmem:[%s246 + $0x2b8] sm:$0xff]
        %v533 = vld [vmem:[%s246 + $0x2c0] sm:$0xff]
        %v534 = vld [vmem:[%s246 + $0x2c8] sm:$0xff]
        %v535 = vld [vmem:[%s246 + $0x2d0] sm:$0xff]
        %v536 = vld [vmem:[%s246 + $0x2d8] sm:$0xff]
        %v537 = vld [vmem:[%s246 + $0x2e0] sm:$0xff]
        %v538 = vld [vmem:[%s246 + $0x2e8] sm:$0xff]
        %v539 = vld [vmem:[%s246 + $0x2f0] sm:$0xff]
        %v540 = vld [vmem:[%s246 + $0x2f8] sm:$0xff]
        %v541 = vld [vmem:[%s256] sm:$0xff]
        %v542 = vld [vmem:[%s256 + $0x8] sm:$0xff]
        %v543 = vld [vmem:[%s256 + $0x10] sm:$0xff]
        %v544 = vld [vmem:[%s256 + $0x18] sm:$0xff]
        %v545 = vld [vmem:[%s256 + $0x20] sm:$0xff]
        %v546 = vld [vmem:[%s256 + $0x28] sm:$0xff]
        %v547 = vld [vmem:[%s256 + $0x30] sm:$0xff]
        %v548 = vld [vmem:[%s256 + $0x38] sm:$0xff]
        %v549 = vld [vmem:[%s256 + $0x40] sm:$0xff]
        %v550 = vld [vmem:[%s256 + $0x48] sm:$0xff]
        %v551 = vld [vmem:[%s256 + $0x50] sm:$0xff]
        %v552 = vld [vmem:[%s256 + $0x58] sm:$0xff]
        %v553 = vld [vmem:[%s256 + $0x60] sm:$0xff]
        %v554 = vld [vmem:[%s256 + $0x68] sm:$0xff]
        %v555 = vld [vmem:[%s256 + $0x70] sm:$0xff]
        %v556 = vld [vmem:[%s256 + $0x78] sm:$0xff]
        %v557 = vld [vmem:[%s256 + $0x80] sm:$0xff]
        %v558 = vld [vmem:[%s256 + $0x88] sm:$0xff]
        %v559 = vld [vmem:[%s256 + $0x90] sm:$0xff]
        %v560 = vld [vmem:[%s256 + $0x98] sm:$0xff]
        %v561 = vld [vmem:[%s256 + $0xa0] sm:$0xff]
        %v562 = vld [vmem:[%s256 + $0xa8] sm:$0xff]
        %v563 = vld [vmem:[%s256 + $0xb0] sm:$0xff]
        %v564 = vld [vmem:[%s256 + $0xb8] sm:$0xff]
        %v565 = vld [vmem:[%s256 + $0xc0] sm:$0xff]
        %v566 = vld [vmem:[%s256 + $0xc8] sm:$0xff]
        %v567 = vld [vmem:[%s256 + $0xd0] sm:$0xff]
        %v568 = vld [vmem:[%s256 + $0xd8] sm:$0xff]
        %v569 = vld [vmem:[%s256 + $0xe0] sm:$0xff]
        %v570 = vld [vmem:[%s256 + $0xe8] sm:$0xff]
        %v571 = vld [vmem:[%s256 + $0xf0] sm:$0xff]
        %v572 = vld [vmem:[%s256 + $0xf8] sm:$0xff]
        %v573 = vld [vmem:[%s256 + $0x100] sm:$0xff]
        %v574 = vld [vmem:[%s256 + $0x108] sm:$0xff]
        %v575 = vld [vmem:[%s256 + $0x110] sm:$0xff]
        %v576 = vld [vmem:[%s256 + $0x118] sm:$0xff]
        %v577 = vld [vmem:[%s256 + $0x120] sm:$0xff]
        %v578 = vld [vmem:[%s256 + $0x128] sm:$0xff]
        %v579 = vld [vmem:[%s256 + $0x130] sm:$0xff]
        %v580 = vld [vmem:[%s256 + $0x138] sm:$0xff]
        %v581 = vld [vmem:[%s256 + $0x140] sm:$0xff]
        %v582 = vld [vmem:[%s256 + $0x148] sm:$0xff]
        %v583 = vld [vmem:[%s256 + $0x150] sm:$0xff]
        %v584 = vld [vmem:[%s256 + $0x158] sm:$0xff]
        %v585 = vld [vmem:[%s256 + $0x160] sm:$0xff]
        %v586 = vld [vmem:[%s256 + $0x168] sm:$0xff]
        %v587 = vld [vmem:[%s256 + $0x170] sm:$0xff]
        %v588 = vld [vmem:[%s256 + $0x178] sm:$0xff]
        %v589 = vld [vmem:[%s256 + $0x180] sm:$0xff]
        %v590 = vld [vmem:[%s256 + $0x188] sm:$0xff]
        %v591 = vld [vmem:[%s256 + $0x190] sm:$0xff]
        %v592 = vld [vmem:[%s256 + $0x198] sm:$0xff]
        %v593 = vld [vmem:[%s256 + $0x1a0] sm:$0xff]
        %v594 = vld [vmem:[%s256 + $0x1a8] sm:$0xff]
        %v595 = vld [vmem:[%s256 + $0x1b0] sm:$0xff]
        %v596 = vld [vmem:[%s256 + $0x1b8] sm:$0xff]
        %v597 = vld [vmem:[%s256 + $0x1c0] sm:$0xff]
        %v598 = vld [vmem:[%s256 + $0x1c8] sm:$0xff]
        %v599 = vld [vmem:[%s256 + $0x1d0] sm:$0xff]
        %v600 = vld [vmem:[%s256 + $0x1d8] sm:$0xff]
        %v601 = vld [vmem:[%s256 + $0x1e0] sm:$0xff]
        %v602 = vld [vmem:[%s256 + $0x1e8] sm:$0xff]
        %v603 = vld [vmem:[%s256 + $0x1f0] sm:$0xff]
        %v604 = vld [vmem:[%s256 + $0x1f8] sm:$0xff]
        %v605 = vld [vmem:[%s256 + $0x200] sm:$0xff]
        %v606 = vld [vmem:[%s256 + $0x208] sm:$0xff]
        %v607 = vld [vmem:[%s256 + $0x210] sm:$0xff]
        %v608 = vld [vmem:[%s256 + $0x218] sm:$0xff]
        %v609 = vld [vmem:[%s256 + $0x220] sm:$0xff]
        %v610 = vld [vmem:[%s256 + $0x228] sm:$0xff]
        %v611 = vld [vmem:[%s256 + $0x230] sm:$0xff]
        %v612 = vld [vmem:[%s256 + $0x238] sm:$0xff]
        %v613 = vld [vmem:[%s256 + $0x240] sm:$0xff]
        %v614 = vld [vmem:[%s256 + $0x248] sm:$0xff]
        %v615 = vld [vmem:[%s256 + $0x250] sm:$0xff]
        %v616 = vld [vmem:[%s256 + $0x258] sm:$0xff]
        %v617 = vld [vmem:[%s256 + $0x260] sm:$0xff]
        %v618 = vld [vmem:[%s256 + $0x268] sm:$0xff]
        %v619 = vld [vmem:[%s256 + $0x270] sm:$0xff]
        %v620 = vld [vmem:[%s256 + $0x278] sm:$0xff]
        %v621 = vld [vmem:[%s256 + $0x280] sm:$0xff]
        %v622 = vld [vmem:[%s256 + $0x288] sm:$0xff]
        %v623 = vld [vmem:[%s256 + $0x290] sm:$0xff]
        %v624 = vld [vmem:[%s256 + $0x298] sm:$0xff]
        %v625 = vld [vmem:[%s256 + $0x2a0] sm:$0xff]
        %v626 = vld [vmem:[%s256 + $0x2a8] sm:$0xff]
        %v627 = vld [vmem:[%s256 + $0x2b0] sm:$0xff]
        %v628 = vld [vmem:[%s256 + $0x2b8] sm:$0xff]
        %v629 = vld [vmem:[%s256 + $0x2c0] sm:$0xff]
        %v630 = vld [vmem:[%s256 + $0x2c8] sm:$0xff]
        %v631 = vld [vmem:[%s256 + $0x2d0] sm:$0xff]
        %v632 = vld [vmem:[%s256 + $0x2d8] sm:$0xff]
        %v633 = vld [vmem:[%s256 + $0x2e0] sm:$0xff]
        %v634 = vld [vmem:[%s256 + $0x2e8] sm:$0xff]
        %v635 = vld [vmem:[%s256 + $0x2f0] sm:$0xff]
        %v636 = vld [vmem:[%s256 + $0x2f8] sm:$0xff]
        %637 = vmatpush.msra.mxu0 %v571
        %638 = vmatpush.msra.mxu0 %v569
        %639 = vmatpush.msra.mxu0 %v567
        %640 = vmatpush.msra.mxu0 %v565
        %641 = vmatpush.msra.mxu0 %v563
        %642 = vmatpush.msra.mxu0 %v561
        %643 = vmatpush.msra.mxu0 %v559
        %644 = vmatpush.msra.mxu0 %v557
        %645 = vmatpush.msra.mxu0 %v555
        %646 = vmatpush.msra.mxu0 %v553
        %647 = vmatpush.msra.mxu0 %v551
        %648 = vmatpush.msra.mxu0 %v549
        %649 = vmatpush.msra.mxu0 %v547
        %650 = vmatpush.msra.mxu0 %v545
        %651 = vmatpush.msra.mxu0 %v543
        %652 = vmatpush.msra.mxu0 %v541
        %653 = vmatmul.f32.gmra.mxu0 %v445
        %v654 = vpop.f32.mrf.mxu0
        %v655 = vadd.f32 0.0, %v654
        %656 = vmatmul.f32.gmra.mxu0 %v448
        %v657 = vpop.f32.mrf.mxu0
        %v658 = vadd.f32 0.0, %v657
        %659 = vmatmul.f32.gmra.mxu0 %v451
        %v660 = vpop.f32.mrf.mxu0
        %v661 = vadd.f32 0.0, %v660
        %662 = vmatmul.f32.gmra.mxu0 %v454
        %v663 = vpop.f32.mrf.mxu0
        %v664 = vadd.f32 0.0, %v663
        %665 = vmatmul.f32.gmra.mxu0 %v457
        %v666 = vpop.f32.mrf.mxu0
        %v667 = vadd.f32 0.0, %v666
        %668 = vmatmul.f32.gmra.mxu0 %v460
        %v669 = vpop.f32.mrf.mxu0
        %v670 = vadd.f32 0.0, %v669
        %671 = vmatmul.f32.gmra.mxu0 %v463
        %v672 = vpop.f32.mrf.mxu0
        %v673 = vadd.f32 0.0, %v672
        %674 = vmatmul.f32.gmra.mxu0 %v466
        %v675 = vpop.f32.mrf.mxu0
        %v676 = vadd.f32 0.0, %v675
        %677 = vmatmul.f32.gmra.mxu0 %v469
        %v678 = vpop.f32.mrf.mxu0
        %v679 = vadd.f32 0.0, %v678
        %680 = vmatmul.f32.gmra.mxu0 %v472
        %v681 = vpop.f32.mrf.mxu0
        %v682 = vadd.f32 0.0, %v681
        %683 = vmatmul.f32.gmra.mxu0 %v475
        %v684 = vpop.f32.mrf.mxu0
        %v685 = vadd.f32 0.0, %v684
        %686 = vmatmul.f32.gmra.mxu0 %v478
        %v687 = vpop.f32.mrf.mxu0
        %v688 = vadd.f32 0.0, %v687
        %689 = vmatmul.f32.gmra.mxu0 %v481
        %v690 = vpop.f32.mrf.mxu0
        %v691 = vadd.f32 0.0, %v690
        %692 = vmatmul.f32.gmra.mxu0 %v484
        %v693 = vpop.f32.mrf.mxu0
        %v694 = vadd.f32 0.0, %v693
        %695 = vmatmul.f32.gmra.mxu0 %v487
        %v696 = vpop.f32.mrf.mxu0
        %v697 = vadd.f32 0.0, %v696
        %698 = vmatmul.f32.gmra.mxu0 %v490
        %v699 = vpop.f32.mrf.mxu0
        %v700 = vadd.f32 0.0, %v699
        %701 = vmatmul.f32.gmra.mxu0 %v493
        %v702 = vpop.f32.mrf.mxu0
        %v703 = vadd.f32 0.0, %v702
        %704 = vmatmul.f32.gmra.mxu0 %v496
        %v705 = vpop.f32.mrf.mxu0
        %v706 = vadd.f32 0.0, %v705
        %707 = vmatmul.f32.gmra.mxu0 %v499
        %v708 = vpop.f32.mrf.mxu0
        %v709 = vadd.f32 0.0, %v708
        %710 = vmatmul.f32.gmra.mxu0 %v502
        %v711 = vpop.f32.mrf.mxu0
        %v712 = vadd.f32 0.0, %v711
        %713 = vmatmul.f32.gmra.mxu0 %v505
        %v714 = vpop.f32.mrf.mxu0
        %v715 = vadd.f32 0.0, %v714
        %716 = vmatmul.f32.gmra.mxu0 %v508
        %v717 = vpop.f32.mrf.mxu0
        %v718 = vadd.f32 0.0, %v717
        %719 = vmatmul.f32.gmra.mxu0 %v511
        %v720 = vpop.f32.mrf.mxu0
        %v721 = vadd.f32 0.0, %v720
        %722 = vmatmul.f32.gmra.mxu0 %v514
        %v723 = vpop.f32.mrf.mxu0
        %v724 = vadd.f32 0.0, %v723
        %725 = vmatmul.f32.gmra.mxu0 %v517
        %v726 = vpop.f32.mrf.mxu0
        %v727 = vadd.f32 0.0, %v726
        %728 = vmatmul.f32.gmra.mxu0 %v520
        %v729 = vpop.f32.mrf.mxu0
        %v730 = vadd.f32 0.0, %v729
        %731 = vmatmul.f32.gmra.mxu0 %v523
        %v732 = vpop.f32.mrf.mxu0
        %v733 = vadd.f32 0.0, %v732
        %734 = vmatmul.f32.gmra.mxu0 %v526
        %v735 = vpop.f32.mrf.mxu0
        %v736 = vadd.f32 0.0, %v735
        %737 = vmatmul.f32.gmra.mxu0 %v529
        %v738 = vpop.f32.mrf.mxu0
        %v739 = vadd.f32 0.0, %v738
        %740 = vmatmul.f32.gmra.mxu0 %v532
        %v741 = vpop.f32.mrf.mxu0
        %v742 = vadd.f32 0.0, %v741
        %743 = vmatmul.f32.gmra.mxu0 %v535
        %v744 = vpop.f32.mrf.mxu0
        %v745 = vadd.f32 0.0, %v744
        %746 = vmatmul.f32.gmra.mxu0 %v538
        %v747 = vpop.f32.mrf.mxu0
        %v748 = vadd.f32 0.0, %v747
        %749 = vdwg.mxu0
        %750 = vmatpush.msra.mxu0 %v603
        %751 = vmatpush.msra.mxu0 %v601
        %752 = vmatpush.msra.mxu0 %v599
        %753 = vmatpush.msra.mxu0 %v597
        %754 = vmatpush.msra.mxu0 %v595
        %755 = vmatpush.msra.mxu0 %v593
        %756 = vmatpush.msra.mxu0 %v591
        %757 = vmatpush.msra.mxu0 %v589
        %758 = vmatpush.msra.mxu0 %v587
        %759 = vmatpush.msra.mxu0 %v585
        %760 = vmatpush.msra.mxu0 %v583
        %761 = vmatpush.msra.mxu0 %v581
        %762 = vmatpush.msra.mxu0 %v579
        %763 = vmatpush.msra.mxu0 %v577
        %764 = vmatpush.msra.mxu0 %v575
        %765 = vmatpush.msra.mxu0 %v573
        %766 = vmatmul.f32.gmra.mxu0 %v446
        %v767 = vpop.f32.mrf.mxu0
        %v768 = vadd.f32 %v655, %v767
        %769 = vmatmul.f32.gmra.mxu0 %v449
        %v770 = vpop.f32.mrf.mxu0
        %v771 = vadd.f32 %v658, %v770
        %772 = vmatmul.f32.gmra.mxu0 %v452
        %v773 = vpop.f32.mrf.mxu0
        %v774 = vadd.f32 %v661, %v773
        %775 = vmatmul.f32.gmra.mxu0 %v455
        %v776 = vpop.f32.mrf.mxu0
        %v777 = vadd.f32 %v664, %v776
        %778 = vmatmul.f32.gmra.mxu0 %v458
        %v779 = vpop.f32.mrf.mxu0
        %v780 = vadd.f32 %v667, %v779
        %781 = vmatmul.f32.gmra.mxu0 %v461
        %v782 = vpop.f32.mrf.mxu0
        %v783 = vadd.f32 %v670, %v782
        %784 = vmatmul.f32.gmra.mxu0 %v464
        %v785 = vpop.f32.mrf.mxu0
        %v786 = vadd.f32 %v673, %v785
        %787 = vmatmul.f32.gmra.mxu0 %v467
        %v788 = vpop.f32.mrf.mxu0
        %v789 = vadd.f32 %v676, %v788
        %790 = vmatmul.f32.gmra.mxu0 %v470
        %v791 = vpop.f32.mrf.mxu0
        %v792 = vadd.f32 %v679, %v791
        %793 = vmatmul.f32.gmra.mxu0 %v473
        %v794 = vpop.f32.mrf.mxu0
        %v795 = vadd.f32 %v682, %v794
        %796 = vmatmul.f32.gmra.mxu0 %v476
        %v797 = vpop.f32.mrf.mxu0
        %v798 = vadd.f32 %v685, %v797
        %799 = vmatmul.f32.gmra.mxu0 %v479
        %v800 = vpop.f32.mrf.mxu0
        %v801 = vadd.f32 %v688, %v800
        %802 = vmatmul.f32.gmra.mxu0 %v482
        %v803 = vpop.f32.mrf.mxu0
        %v804 = vadd.f32 %v691, %v803
        %805 = vmatmul.f32.gmra.mxu0 %v485
        %v806 = vpop.f32.mrf.mxu0
        %v807 = vadd.f32 %v694, %v806
        %808 = vmatmul.f32.gmra.mxu0 %v488
        %v809 = vpop.f32.mrf.mxu0
        %v810 = vadd.f32 %v697, %v809
        %811 = vmatmul.f32.gmra.mxu0 %v491
        %v812 = vpop.f32.mrf.mxu0
        %v813 = vadd.f32 %v700, %v812
        %814 = vmatmul.f32.gmra.mxu0 %v494
        %v815 = vpop.f32.mrf.mxu0
        %v816 = vadd.f32 %v703, %v815
        %817 = vmatmul.f32.gmra.mxu0 %v497
        %v818 = vpop.f32.mrf.mxu0
        %v819 = vadd.f32 %v706, %v818
        %820 = vmatmul.f32.gmra.mxu0 %v500
        %v821 = vpop.f32.mrf.mxu0
        %v822 = vadd.f32 %v709, %v821
        %823 = vmatmul.f32.gmra.mxu0 %v503
        %v824 = vpop.f32.mrf.mxu0
        %v825 = vadd.f32 %v712, %v824
        %826 = vmatmul.f32.gmra.mxu0 %v506
        %v827 = vpop.f32.mrf.mxu0
        %v828 = vadd.f32 %v715, %v827
        %829 = vmatmul.f32.gmra.mxu0 %v509
        %v830 = vpop.f32.mrf.mxu0
        %v831 = vadd.f32 %v718, %v830
        %832 = vmatmul.f32.gmra.mxu0 %v512
        %v833 = vpop.f32.mrf.mxu0
        %v834 = vadd.f32 %v721, %v833
        %835 = vmatmul.f32.gmra.mxu0 %v515
        %v836 = vpop.f32.mrf.mxu0
        %v837 = vadd.f32 %v724, %v836
        %838 = vmatmul.f32.gmra.mxu0 %v518
        %v839 = vpop.f32.mrf.mxu0
        %v840 = vadd.f32 %v727, %v839
        %841 = vmatmul.f32.gmra.mxu0 %v521
        %v842 = vpop.f32.mrf.mxu0
        %v843 = vadd.f32 %v730, %v842
        %844 = vmatmul.f32.gmra.mxu0 %v524
        %v845 = vpop.f32.mrf.mxu0
        %v846 = vadd.f32 %v733, %v845
        %847 = vmatmul.f32.gmra.mxu0 %v527
        %v848 = vpop.f32.mrf.mxu0
        %v849 = vadd.f32 %v736, %v848
        %850 = vmatmul.f32.gmra.mxu0 %v530
        %v851 = vpop.f32.mrf.mxu0
        %v852 = vadd.f32 %v739, %v851
        %853 = vmatmul.f32.gmra.mxu0 %v533
        %v854 = vpop.f32.mrf.mxu0
        %v855 = vadd.f32 %v742, %v854
        %856 = vmatmul.f32.gmra.mxu0 %v536
        %v857 = vpop.f32.mrf.mxu0
        %v858 = vadd.f32 %v745, %v857
        %859 = vmatmul.f32.gmra.mxu0 %v539
        %v860 = vpop.f32.mrf.mxu0
        %v861 = vadd.f32 %v748, %v860
        %862 = vdwg.mxu0
        %863 = vmatpush.msra.mxu0 %v635
        %864 = vmatpush.msra.mxu0 %v633
        %865 = vmatpush.msra.mxu0 %v631
        %866 = vmatpush.msra.mxu0 %v629
        %867 = vmatpush.msra.mxu0 %v627
        %868 = vmatpush.msra.mxu0 %v625
        %869 = vmatpush.msra.mxu0 %v623
        %870 = vmatpush.msra.mxu0 %v621
        %871 = vmatpush.msra.mxu0 %v619
        %872 = vmatpush.msra.mxu0 %v617
        %873 = vmatpush.msra.mxu0 %v615
        %874 = vmatpush.msra.mxu0 %v613
        %875 = vmatpush.msra.mxu0 %v611
        %876 = vmatpush.msra.mxu0 %v609
        %877 = vmatpush.msra.mxu0 %v607
        %878 = vmatpush.msra.mxu0 %v605
        %879 = vmatmul.f32.gmra.mxu0 %v447
        %v880 = vpop.f32.mrf.mxu0
        %v881 = vadd.f32 %v768, %v880
        %882 = vmatmul.f32.gmra.mxu0 %v450
        %v883 = vpop.f32.mrf.mxu0
        %v884 = vadd.f32 %v771, %v883
        %885 = vmatmul.f32.gmra.mxu0 %v453
        %v886 = vpop.f32.mrf.mxu0
        %v887 = vadd.f32 %v774, %v886
        %888 = vmatmul.f32.gmra.mxu0 %v456
        %v889 = vpop.f32.mrf.mxu0
        %v890 = vadd.f32 %v777, %v889
        %891 = vmatmul.f32.gmra.mxu0 %v459
        %v892 = vpop.f32.mrf.mxu0
        %v893 = vadd.f32 %v780, %v892
        %894 = vmatmul.f32.gmra.mxu0 %v462
        %v895 = vpop.f32.mrf.mxu0
        %v896 = vadd.f32 %v783, %v895
        %897 = vmatmul.f32.gmra.mxu0 %v465
        %v898 = vpop.f32.mrf.mxu0
        %v899 = vadd.f32 %v786, %v898
        %900 = vmatmul.f32.gmra.mxu0 %v468
        %v901 = vpop.f32.mrf.mxu0
        %v902 = vadd.f32 %v789, %v901
        %903 = vmatmul.f32.gmra.mxu0 %v471
        %v904 = vpop.f32.mrf.mxu0
        %v905 = vadd.f32 %v792, %v904
        %906 = vmatmul.f32.gmra.mxu0 %v474
        %v907 = vpop.f32.mrf.mxu0
        %v908 = vadd.f32 %v795, %v907
        %909 = vmatmul.f32.gmra.mxu0 %v477
        %v910 = vpop.f32.mrf.mxu0
        %v911 = vadd.f32 %v798, %v910
        %912 = vmatmul.f32.gmra.mxu0 %v480
        %v913 = vpop.f32.mrf.mxu0
        %v914 = vadd.f32 %v801, %v913
        %915 = vmatmul.f32.gmra.mxu0 %v483
        %v916 = vpop.f32.mrf.mxu0
        %v917 = vadd.f32 %v804, %v916
        %918 = vmatmul.f32.gmra.mxu0 %v486
        %v919 = vpop.f32.mrf.mxu0
        %v920 = vadd.f32 %v807, %v919
        %921 = vmatmul.f32.gmra.mxu0 %v489
        %v922 = vpop.f32.mrf.mxu0
        %v923 = vadd.f32 %v810, %v922
        %924 = vmatmul.f32.gmra.mxu0 %v492
        %v925 = vpop.f32.mrf.mxu0
        %v926 = vadd.f32 %v813, %v925
        %927 = vmatmul.f32.gmra.mxu0 %v495
        %v928 = vpop.f32.mrf.mxu0
        %v929 = vadd.f32 %v816, %v928
        %930 = vmatmul.f32.gmra.mxu0 %v498
        %v931 = vpop.f32.mrf.mxu0
        %v932 = vadd.f32 %v819, %v931
        %933 = vmatmul.f32.gmra.mxu0 %v501
        %v934 = vpop.f32.mrf.mxu0
        %v935 = vadd.f32 %v822, %v934
        %936 = vmatmul.f32.gmra.mxu0 %v504
        %v937 = vpop.f32.mrf.mxu0
        %v938 = vadd.f32 %v825, %v937
        %939 = vmatmul.f32.gmra.mxu0 %v507
        %v940 = vpop.f32.mrf.mxu0
        %v941 = vadd.f32 %v828, %v940
        %942 = vmatmul.f32.gmra.mxu0 %v510
        %v943 = vpop.f32.mrf.mxu0
        %v944 = vadd.f32 %v831, %v943
        %945 = vmatmul.f32.gmra.mxu0 %v513
        %v946 = vpop.f32.mrf.mxu0
        %v947 = vadd.f32 %v834, %v946
        %948 = vmatmul.f32.gmra.mxu0 %v516
        %v949 = vpop.f32.mrf.mxu0
        %v950 = vadd.f32 %v837, %v949
        %951 = vmatmul.f32.gmra.mxu0 %v519
        %v952 = vpop.f32.mrf.mxu0
        %v953 = vadd.f32 %v840, %v952
        %954 = vmatmul.f32.gmra.mxu0 %v522
        %v955 = vpop.f32.mrf.mxu0
        %v956 = vadd.f32 %v843, %v955
        %957 = vmatmul.f32.gmra.mxu0 %v525
        %v958 = vpop.f32.mrf.mxu0
        %v959 = vadd.f32 %v846, %v958
        %960 = vmatmul.f32.gmra.mxu0 %v528
        %v961 = vpop.f32.mrf.mxu0
        %v962 = vadd.f32 %v849, %v961
        %963 = vmatmul.f32.gmra.mxu0 %v531
        %v964 = vpop.f32.mrf.mxu0
        %v965 = vadd.f32 %v852, %v964
        %966 = vmatmul.f32.gmra.mxu0 %v534
        %v967 = vpop.f32.mrf.mxu0
        %v968 = vadd.f32 %v855, %v967
        %969 = vmatmul.f32.gmra.mxu0 %v537
        %v970 = vpop.f32.mrf.mxu0
        %v971 = vadd.f32 %v858, %v970
        %972 = vmatmul.f32.gmra.mxu0 %v540
        %v973 = vpop.f32.mrf.mxu0
        %v974 = vadd.f32 %v861, %v973
        %975 = vdwg.mxu0
        %976 = vmatpush.msra.mxu0 %v572
        %977 = vmatpush.msra.mxu0 %v570
        %978 = vmatpush.msra.mxu0 %v568
        %979 = vmatpush.msra.mxu0 %v566
        %980 = vmatpush.msra.mxu0 %v564
        %981 = vmatpush.msra.mxu0 %v562
        %982 = vmatpush.msra.mxu0 %v560
        %983 = vmatpush.msra.mxu0 %v558
        %984 = vmatpush.msra.mxu0 %v556
        %985 = vmatpush.msra.mxu0 %v554
        %986 = vmatpush.msra.mxu0 %v552
        %987 = vmatpush.msra.mxu0 %v550
        %988 = vmatpush.msra.mxu0 %v548
        %989 = vmatpush.msra.mxu0 %v546
        %990 = vmatpush.msra.mxu0 %v544
        %991 = vmatpush.msra.mxu0 %v542
        %992 = vmatmul.f32.gmra.mxu0 %v445
        %v993 = vpop.f32.mrf.mxu0
        %v994 = vadd.f32 0.0, %v993
        %995 = vmatmul.f32.gmra.mxu0 %v448
        %v996 = vpop.f32.mrf.mxu0
        %v997 = vadd.f32 0.0, %v996
        %998 = vmatmul.f32.gmra.mxu0 %v451
        %v999 = vpop.f32.mrf.mxu0
        %v1000 = vadd.f32 0.0, %v999
        %1001 = vmatmul.f32.gmra.mxu0 %v454
        %v1002 = vpop.f32.mrf.mxu0
        %v1003 = vadd.f32 0.0, %v1002
        %1004 = vmatmul.f32.gmra.mxu0 %v457
        %v1005 = vpop.f32.mrf.mxu0
        %v1006 = vadd.f32 0.0, %v1005
        %1007 = vmatmul.f32.gmra.mxu0 %v460
        %v1008 = vpop.f32.mrf.mxu0
        %v1009 = vadd.f32 0.0, %v1008
        %1010 = vmatmul.f32.gmra.mxu0 %v463
        %v1011 = vpop.f32.mrf.mxu0
        %v1012 = vadd.f32 0.0, %v1011
        %1013 = vmatmul.f32.gmra.mxu0 %v466
        %v1014 = vpop.f32.mrf.mxu0
        %v1015 = vadd.f32 0.0, %v1014
        %1016 = vmatmul.f32.gmra.mxu0 %v469
        %v1017 = vpop.f32.mrf.mxu0
        %v1018 = vadd.f32 0.0, %v1017
        %1019 = vmatmul.f32.gmra.mxu0 %v472
        %v1020 = vpop.f32.mrf.mxu0
        %v1021 = vadd.f32 0.0, %v1020
        %1022 = vmatmul.f32.gmra.mxu0 %v475
        %v1023 = vpop.f32.mrf.mxu0
        %v1024 = vadd.f32 0.0, %v1023
        %1025 = vmatmul.f32.gmra.mxu0 %v478
        %v1026 = vpop.f32.mrf.mxu0
        %v1027 = vadd.f32 0.0, %v1026
        %1028 = vmatmul.f32.gmra.mxu0 %v481
        %v1029 = vpop.f32.mrf.mxu0
        %v1030 = vadd.f32 0.0, %v1029
        %1031 = vmatmul.f32.gmra.mxu0 %v484
        %v1032 = vpop.f32.mrf.mxu0
        %v1033 = vadd.f32 0.0, %v1032
        %1034 = vmatmul.f32.gmra.mxu0 %v487
        %v1035 = vpop.f32.mrf.mxu0
        %v1036 = vadd.f32 0.0, %v1035
        %1037 = vmatmul.f32.gmra.mxu0 %v490
        %v1038 = vpop.f32.mrf.mxu0
        %v1039 = vadd.f32 0.0, %v1038
        %1040 = vmatmul.f32.gmra.mxu0 %v493
        %v1041 = vpop.f32.mrf.mxu0
        %v1042 = vadd.f32 0.0, %v1041
        %1043 = vmatmul.f32.gmra.mxu0 %v496
        %v1044 = vpop.f32.mrf.mxu0
        %v1045 = vadd.f32 0.0, %v1044
        %1046 = vmatmul.f32.gmra.mxu0 %v499
        %v1047 = vpop.f32.mrf.mxu0
        %v1048 = vadd.f32 0.0, %v1047
        %1049 = vmatmul.f32.gmra.mxu0 %v502
        %v1050 = vpop.f32.mrf.mxu0
        %v1051 = vadd.f32 0.0, %v1050
        %1052 = vmatmul.f32.gmra.mxu0 %v505
        %v1053 = vpop.f32.mrf.mxu0
        %v1054 = vadd.f32 0.0, %v1053
        %1055 = vmatmul.f32.gmra.mxu0 %v508
        %v1056 = vpop.f32.mrf.mxu0
        %v1057 = vadd.f32 0.0, %v1056
        %1058 = vmatmul.f32.gmra.mxu0 %v511
        %v1059 = vpop.f32.mrf.mxu0
        %v1060 = vadd.f32 0.0, %v1059
        %1061 = vmatmul.f32.gmra.mxu0 %v514
        %v1062 = vpop.f32.mrf.mxu0
        %v1063 = vadd.f32 0.0, %v1062
        %1064 = vmatmul.f32.gmra.mxu0 %v517
        %v1065 = vpop.f32.mrf.mxu0
        %v1066 = vadd.f32 0.0, %v1065
        %1067 = vmatmul.f32.gmra.mxu0 %v520
        %v1068 = vpop.f32.mrf.mxu0
        %v1069 = vadd.f32 0.0, %v1068
        %1070 = vmatmul.f32.gmra.mxu0 %v523
        %v1071 = vpop.f32.mrf.mxu0
        %v1072 = vadd.f32 0.0, %v1071
        %1073 = vmatmul.f32.gmra.mxu0 %v526
        %v1074 = vpop.f32.mrf.mxu0
        %v1075 = vadd.f32 0.0, %v1074
        %1076 = vmatmul.f32.gmra.mxu0 %v529
        %v1077 = vpop.f32.mrf.mxu0
        %v1078 = vadd.f32 0.0, %v1077
        %1079 = vmatmul.f32.gmra.mxu0 %v532
        %v1080 = vpop.f32.mrf.mxu0
        %v1081 = vadd.f32 0.0, %v1080
        %1082 = vmatmul.f32.gmra.mxu0 %v535
        %v1083 = vpop.f32.mrf.mxu0
        %v1084 = vadd.f32 0.0, %v1083
        %1085 = vmatmul.f32.gmra.mxu0 %v538
        %v1086 = vpop.f32.mrf.mxu0
        %v1087 = vadd.f32 0.0, %v1086
        %1088 = vdwg.mxu0
        %1089 = vmatpush.msra.mxu0 %v604
        %1090 = vmatpush.msra.mxu0 %v602
        %1091 = vmatpush.msra.mxu0 %v600
        %1092 = vmatpush.msra.mxu0 %v598
        %1093 = vmatpush.msra.mxu0 %v596
        %1094 = vmatpush.msra.mxu0 %v594
        %1095 = vmatpush.msra.mxu0 %v592
        %1096 = vmatpush.msra.mxu0 %v590
        %1097 = vmatpush.msra.mxu0 %v588
        %1098 = vmatpush.msra.mxu0 %v586
        %1099 = vmatpush.msra.mxu0 %v584
        %1100 = vmatpush.msra.mxu0 %v582
        %1101 = vmatpush.msra.mxu0 %v580
        %1102 = vmatpush.msra.mxu0 %v578
        %1103 = vmatpush.msra.mxu0 %v576
        %1104 = vmatpush.msra.mxu0 %v574
        %1105 = vmatmul.f32.gmra.mxu0 %v446
        %v1106 = vpop.f32.mrf.mxu0
        %v1107 = vadd.f32 %v994, %v1106
        %1108 = vmatmul.f32.gmra.mxu0 %v449
        %v1109 = vpop.f32.mrf.mxu0
        %v1110 = vadd.f32 %v997, %v1109
        %1111 = vmatmul.f32.gmra.mxu0 %v452
        %v1112 = vpop.f32.mrf.mxu0
        %v1113 = vadd.f32 %v1000, %v1112
        %1114 = vmatmul.f32.gmra.mxu0 %v455
        %v1115 = vpop.f32.mrf.mxu0
        %v1116 = vadd.f32 %v1003, %v1115
        %1117 = vmatmul.f32.gmra.mxu0 %v458
        %v1118 = vpop.f32.mrf.mxu0
        %v1119 = vadd.f32 %v1006, %v1118
        %1120 = vmatmul.f32.gmra.mxu0 %v461
        %v1121 = vpop.f32.mrf.mxu0
        %v1122 = vadd.f32 %v1009, %v1121
        %1123 = vmatmul.f32.gmra.mxu0 %v464
        %v1124 = vpop.f32.mrf.mxu0
        %v1125 = vadd.f32 %v1012, %v1124
        %1126 = vmatmul.f32.gmra.mxu0 %v467
        %v1127 = vpop.f32.mrf.mxu0
        %v1128 = vadd.f32 %v1015, %v1127
        %1129 = vmatmul.f32.gmra.mxu0 %v470
        %v1130 = vpop.f32.mrf.mxu0
        %v1131 = vadd.f32 %v1018, %v1130
        %1132 = vmatmul.f32.gmra.mxu0 %v473
        %v1133 = vpop.f32.mrf.mxu0
        %v1134 = vadd.f32 %v1021, %v1133
        %1135 = vmatmul.f32.gmra.mxu0 %v476
        %v1136 = vpop.f32.mrf.mxu0
        %v1137 = vadd.f32 %v1024, %v1136
        %1138 = vmatmul.f32.gmra.mxu0 %v479
        %v1139 = vpop.f32.mrf.mxu0
        %v1140 = vadd.f32 %v1027, %v1139
        %1141 = vmatmul.f32.gmra.mxu0 %v482
        %v1142 = vpop.f32.mrf.mxu0
        %v1143 = vadd.f32 %v1030, %v1142
        %1144 = vmatmul.f32.gmra.mxu0 %v485
        %v1145 = vpop.f32.mrf.mxu0
        %v1146 = vadd.f32 %v1033, %v1145
        %1147 = vmatmul.f32.gmra.mxu0 %v488
        %v1148 = vpop.f32.mrf.mxu0
        %v1149 = vadd.f32 %v1036, %v1148
        %1150 = vmatmul.f32.gmra.mxu0 %v491
        %v1151 = vpop.f32.mrf.mxu0
        %v1152 = vadd.f32 %v1039, %v1151
        %1153 = vmatmul.f32.gmra.mxu0 %v494
        %v1154 = vpop.f32.mrf.mxu0
        %v1155 = vadd.f32 %v1042, %v1154
        %1156 = vmatmul.f32.gmra.mxu0 %v497
        %v1157 = vpop.f32.mrf.mxu0
        %v1158 = vadd.f32 %v1045, %v1157
        %1159 = vmatmul.f32.gmra.mxu0 %v500
        %v1160 = vpop.f32.mrf.mxu0
        %v1161 = vadd.f32 %v1048, %v1160
        %1162 = vmatmul.f32.gmra.mxu0 %v503
        %v1163 = vpop.f32.mrf.mxu0
        %v1164 = vadd.f32 %v1051, %v1163
        %1165 = vmatmul.f32.gmra.mxu0 %v506
        %v1166 = vpop.f32.mrf.mxu0
        %v1167 = vadd.f32 %v1054, %v1166
        %1168 = vmatmul.f32.gmra.mxu0 %v509
        %v1169 = vpop.f32.mrf.mxu0
        %v1170 = vadd.f32 %v1057, %v1169
        %1171 = vmatmul.f32.gmra.mxu0 %v512
        %v1172 = vpop.f32.mrf.mxu0
        %v1173 = vadd.f32 %v1060, %v1172
        %1174 = vmatmul.f32.gmra.mxu0 %v515
        %v1175 = vpop.f32.mrf.mxu0
        %v1176 = vadd.f32 %v1063, %v1175
        %1177 = vmatmul.f32.gmra.mxu0 %v518
        %v1178 = vpop.f32.mrf.mxu0
        %v1179 = vadd.f32 %v1066, %v1178
        %1180 = vmatmul.f32.gmra.mxu0 %v521
        %v1181 = vpop.f32.mrf.mxu0
        %v1182 = vadd.f32 %v1069, %v1181
        %1183 = vmatmul.f32.gmra.mxu0 %v524
        %v1184 = vpop.f32.mrf.mxu0
        %v1185 = vadd.f32 %v1072, %v1184
        %1186 = vmatmul.f32.gmra.mxu0 %v527
        %v1187 = vpop.f32.mrf.mxu0
        %v1188 = vadd.f32 %v1075, %v1187
        %1189 = vmatmul.f32.gmra.mxu0 %v530
        %v1190 = vpop.f32.mrf.mxu0
        %v1191 = vadd.f32 %v1078, %v1190
        %1192 = vmatmul.f32.gmra.mxu0 %v533
        %v1193 = vpop.f32.mrf.mxu0
        %v1194 = vadd.f32 %v1081, %v1193
        %1195 = vmatmul.f32.gmra.mxu0 %v536
        %v1196 = vpop.f32.mrf.mxu0
        %v1197 = vadd.f32 %v1084, %v1196
        %1198 = vmatmul.f32.gmra.mxu0 %v539
        %v1199 = vpop.f32.mrf.mxu0
        %v1200 = vadd.f32 %v1087, %v1199
        %1201 = vdwg.mxu0
        %1202 = vmatpush.msra.mxu0 %v636
        %1203 = vmatpush.msra.mxu0 %v634
        %1204 = vmatpush.msra.mxu0 %v632
        %1205 = vmatpush.msra.mxu0 %v630
        %1206 = vmatpush.msra.mxu0 %v628
        %1207 = vmatpush.msra.mxu0 %v626
        %1208 = vmatpush.msra.mxu0 %v624
        %1209 = vmatpush.msra.mxu0 %v622
        %1210 = vmatpush.msra.mxu0 %v620
        %1211 = vmatpush.msra.mxu0 %v618
        %1212 = vmatpush.msra.mxu0 %v616
        %1213 = vmatpush.msra.mxu0 %v614
        %1214 = vmatpush.msra.mxu0 %v612
        %1215 = vmatpush.msra.mxu0 %v610
        %1216 = vmatpush.msra.mxu0 %v608
        %1217 = vmatpush.msra.mxu0 %v606
        %1218 = vmatmul.f32.gmra.mxu0 %v447
        %v1219 = vpop.f32.mrf.mxu0
        %v1220 = vadd.f32 %v1107, %v1219
        %1221 = vmatmul.f32.gmra.mxu0 %v450
        %v1222 = vpop.f32.mrf.mxu0
        %v1223 = vadd.f32 %v1110, %v1222
        %1224 = vmatmul.f32.gmra.mxu0 %v453
        %v1225 = vpop.f32.mrf.mxu0
        %v1226 = vadd.f32 %v1113, %v1225
        %1227 = vmatmul.f32.gmra.mxu0 %v456
        %v1228 = vpop.f32.mrf.mxu0
        %v1229 = vadd.f32 %v1116, %v1228
        %1230 = vmatmul.f32.gmra.mxu0 %v459
        %v1231 = vpop.f32.mrf.mxu0
        %v1232 = vadd.f32 %v1119, %v1231
        %1233 = vmatmul.f32.gmra.mxu0 %v462
        %v1234 = vpop.f32.mrf.mxu0
        %v1235 = vadd.f32 %v1122, %v1234
        %1236 = vmatmul.f32.gmra.mxu0 %v465
        %v1237 = vpop.f32.mrf.mxu0
        %v1238 = vadd.f32 %v1125, %v1237
        %1239 = vmatmul.f32.gmra.mxu0 %v468
        %v1240 = vpop.f32.mrf.mxu0
        %v1241 = vadd.f32 %v1128, %v1240
        %1242 = vmatmul.f32.gmra.mxu0 %v471
        %v1243 = vpop.f32.mrf.mxu0
        %v1244 = vadd.f32 %v1131, %v1243
        %1245 = vmatmul.f32.gmra.mxu0 %v474
        %v1246 = vpop.f32.mrf.mxu0
        %v1247 = vadd.f32 %v1134, %v1246
        %1248 = vmatmul.f32.gmra.mxu0 %v477
        %v1249 = vpop.f32.mrf.mxu0
        %v1250 = vadd.f32 %v1137, %v1249
        %1251 = vmatmul.f32.gmra.mxu0 %v480
        %v1252 = vpop.f32.mrf.mxu0
        %v1253 = vadd.f32 %v1140, %v1252
        %1254 = vmatmul.f32.gmra.mxu0 %v483
        %v1255 = vpop.f32.mrf.mxu0
        %v1256 = vadd.f32 %v1143, %v1255
        %1257 = vmatmul.f32.gmra.mxu0 %v486
        %v1258 = vpop.f32.mrf.mxu0
        %v1259 = vadd.f32 %v1146, %v1258
        %1260 = vmatmul.f32.gmra.mxu0 %v489
        %v1261 = vpop.f32.mrf.mxu0
        %v1262 = vadd.f32 %v1149, %v1261
        %1263 = vmatmul.f32.gmra.mxu0 %v492
        %v1264 = vpop.f32.mrf.mxu0
        %v1265 = vadd.f32 %v1152, %v1264
        %1266 = vmatmul.f32.gmra.mxu0 %v495
        %v1267 = vpop.f32.mrf.mxu0
        %v1268 = vadd.f32 %v1155, %v1267
        %1269 = vmatmul.f32.gmra.mxu0 %v498
        %v1270 = vpop.f32.mrf.mxu0
        %v1271 = vadd.f32 %v1158, %v1270
        %1272 = vmatmul.f32.gmra.mxu0 %v501
        %v1273 = vpop.f32.mrf.mxu0
        %v1274 = vadd.f32 %v1161, %v1273
        %1275 = vmatmul.f32.gmra.mxu0 %v504
        %v1276 = vpop.f32.mrf.mxu0
        %v1277 = vadd.f32 %v1164, %v1276
        %1278 = vmatmul.f32.gmra.mxu0 %v507
        %v1279 = vpop.f32.mrf.mxu0
        %v1280 = vadd.f32 %v1167, %v1279
        %1281 = vmatmul.f32.gmra.mxu0 %v510
        %v1282 = vpop.f32.mrf.mxu0
        %v1283 = vadd.f32 %v1170, %v1282
        %1284 = vmatmul.f32.gmra.mxu0 %v513
        %v1285 = vpop.f32.mrf.mxu0
        %v1286 = vadd.f32 %v1173, %v1285
        %1287 = vmatmul.f32.gmra.mxu0 %v516
        %v1288 = vpop.f32.mrf.mxu0
        %v1289 = vadd.f32 %v1176, %v1288
        %1290 = vmatmul.f32.gmra.mxu0 %v519
        %v1291 = vpop.f32.mrf.mxu0
        %v1292 = vadd.f32 %v1179, %v1291
        %1293 = vmatmul.f32.gmra.mxu0 %v522
        %v1294 = vpop.f32.mrf.mxu0
        %v1295 = vadd.f32 %v1182, %v1294
        %1296 = vmatmul.f32.gmra.mxu0 %v525
        %v1297 = vpop.f32.mrf.mxu0
        %v1298 = vadd.f32 %v1185, %v1297
        %1299 = vmatmul.f32.gmra.mxu0 %v528
        %v1300 = vpop.f32.mrf.mxu0
        %v1301 = vadd.f32 %v1188, %v1300
        %1302 = vmatmul.f32.gmra.mxu0 %v531
        %v1303 = vpop.f32.mrf.mxu0
        %v1304 = vadd.f32 %v1191, %v1303
        %1305 = vmatmul.f32.gmra.mxu0 %v534
        %v1306 = vpop.f32.mrf.mxu0
        %v1307 = vadd.f32 %v1194, %v1306
        %1308 = vmatmul.f32.gmra.mxu0 %v537
        %v1309 = vpop.f32.mrf.mxu0
        %v1310 = vadd.f32 %v1197, %v1309
        %1311 = vmatmul.f32.gmra.mxu0 %v540
        %v1312 = vpop.f32.mrf.mxu0
        %v1313 = vadd.f32 %v1200, %v1312
        %1314 = vdwg.mxu0
        %v1315 = vadd.f32 %v381, %v881
        %v1316 = vadd.f32 %v382, %v1220
        %v1317 = vadd.f32 %v383, %v884
        %v1318 = vadd.f32 %v384, %v1223
        %v1319 = vadd.f32 %v385, %v887
        %v1320 = vadd.f32 %v386, %v1226
        %v1321 = vadd.f32 %v387, %v890
        %v1322 = vadd.f32 %v388, %v1229
        %v1323 = vadd.f32 %v389, %v893
        %v1324 = vadd.f32 %v390, %v1232
        %v1325 = vadd.f32 %v391, %v896
        %v1326 = vadd.f32 %v392, %v1235
        %v1327 = vadd.f32 %v393, %v899
        %v1328 = vadd.f32 %v394, %v1238
        %v1329 = vadd.f32 %v395, %v902
        %v1330 = vadd.f32 %v396, %v1241
        %v1331 = vadd.f32 %v397, %v905
        %v1332 = vadd.f32 %v398, %v1244
        %v1333 = vadd.f32 %v399, %v908
        %v1334 = vadd.f32 %v400, %v1247
        %v1335 = vadd.f32 %v401, %v911
        %v1336 = vadd.f32 %v402, %v1250
        %v1337 = vadd.f32 %v403, %v914
        %v1338 = vadd.f32 %v404, %v1253
        %v1339 = vadd.f32 %v405, %v917
        %v1340 = vadd.f32 %v406, %v1256
        %v1341 = vadd.f32 %v407, %v920
        %v1342 = vadd.f32 %v408, %v1259
        %v1343 = vadd.f32 %v409, %v923
        %v1344 = vadd.f32 %v410, %v1262
        %v1345 = vadd.f32 %v411, %v926
        %v1346 = vadd.f32 %v412, %v1265
        %v1347 = vadd.f32 %v413, %v929
        %v1348 = vadd.f32 %v414, %v1268
        %v1349 = vadd.f32 %v415, %v932
        %v1350 = vadd.f32 %v416, %v1271
        %v1351 = vadd.f32 %v417, %v935
        %v1352 = vadd.f32 %v418, %v1274
        %v1353 = vadd.f32 %v419, %v938
        %v1354 = vadd.f32 %v420, %v1277
        %v1355 = vadd.f32 %v421, %v941
        %v1356 = vadd.f32 %v422, %v1280
        %v1357 = vadd.f32 %v423, %v944
        %v1358 = vadd.f32 %v424, %v1283
        %v1359 = vadd.f32 %v425, %v947
        %v1360 = vadd.f32 %v426, %v1286
        %v1361 = vadd.f32 %v427, %v950
        %v1362 = vadd.f32 %v428, %v1289
        %v1363 = vadd.f32 %v429, %v953
        %v1364 = vadd.f32 %v430, %v1292
        %v1365 = vadd.f32 %v431, %v956
        %v1366 = vadd.f32 %v432, %v1295
        %v1367 = vadd.f32 %v433, %v959
        %v1368 = vadd.f32 %v434, %v1298
        %v1369 = vadd.f32 %v435, %v962
        %v1370 = vadd.f32 %v436, %v1301
        %v1371 = vadd.f32 %v437, %v965
        %v1372 = vadd.f32 %v438, %v1304
        %v1373 = vadd.f32 %v439, %v968
        %v1374 = vadd.f32 %v440, %v1307
        %v1375 = vadd.f32 %v441, %v971
        %v1376 = vadd.f32 %v442, %v1310
        %v1377 = vadd.f32 %v443, %v974
        %v1378 = vadd.f32 %v444, %v1313
        %1379 = vst [vmem:[%s299] sm:$0xff] %v1315
        %1380 = vst [vmem:[%s299 + $0x8] sm:$0xff] %v1316
        %1381 = vst [vmem:[%s299 + $0x10] sm:$0xff] %v1317
        %1382 = vst [vmem:[%s299 + $0x18] sm:$0xff] %v1318
        %1383 = vst [vmem:[%s299 + $0x20] sm:$0xff] %v1319
        %1384 = vst [vmem:[%s299 + $0x28] sm:$0xff] %v1320
        %1385 = vst [vmem:[%s299 + $0x30] sm:$0xff] %v1321
        %1386 = vst [vmem:[%s299 + $0x38] sm:$0xff] %v1322
        %1387 = vst [vmem:[%s299 + $0x40] sm:$0xff] %v1323
        %1388 = vst [vmem:[%s299 + $0x48] sm:$0xff] %v1324
        %1389 = vst [vmem:[%s299 + $0x50] sm:$0xff] %v1325
        %1390 = vst [vmem:[%s299 + $0x58] sm:$0xff] %v1326
        %1391 = vst [vmem:[%s299 + $0x60] sm:$0xff] %v1327
        %1392 = vst [vmem:[%s299 + $0x68] sm:$0xff] %v1328
        %1393 = vst [vmem:[%s299 + $0x70] sm:$0xff] %v1329
        %1394 = vst [vmem:[%s299 + $0x78] sm:$0xff] %v1330
        %1395 = vst [vmem:[%s299 + $0x80] sm:$0xff] %v1331
        %1396 = vst [vmem:[%s299 + $0x88] sm:$0xff] %v1332
        %1397 = vst [vmem:[%s299 + $0x90] sm:$0xff] %v1333
        %1398 = vst [vmem:[%s299 + $0x98] sm:$0xff] %v1334
        %1399 = vst [vmem:[%s299 + $0xa0] sm:$0xff] %v1335
        %1400 = vst [vmem:[%s299 + $0xa8] sm:$0xff] %v1336
        %1401 = vst [vmem:[%s299 + $0xb0] sm:$0xff] %v1337
        %1402 = vst [vmem:[%s299 + $0xb8] sm:$0xff] %v1338
        %1403 = vst [vmem:[%s299 + $0xc0] sm:$0xff] %v1339
        %1404 = vst [vmem:[%s299 + $0xc8] sm:$0xff] %v1340
        %1405 = vst [vmem:[%s299 + $0xd0] sm:$0xff] %v1341
        %1406 = vst [vmem:[%s299 + $0xd8] sm:$0xff] %v1342
        %1407 = vst [vmem:[%s299 + $0xe0] sm:$0xff] %v1343
        %1408 = vst [vmem:[%s299 + $0xe8] sm:$0xff] %v1344
        %1409 = vst [vmem:[%s299 + $0xf0] sm:$0xff] %v1345
        %1410 = vst [vmem:[%s299 + $0xf8] sm:$0xff] %v1346
        %1411 = vst [vmem:[%s299 + $0x100] sm:$0xff] %v1347
        %1412 = vst [vmem:[%s299 + $0x108] sm:$0xff] %v1348
        %1413 = vst [vmem:[%s299 + $0x110] sm:$0xff] %v1349
        %1414 = vst [vmem:[%s299 + $0x118] sm:$0xff] %v1350
        %1415 = vst [vmem:[%s299 + $0x120] sm:$0xff] %v1351
        %1416 = vst [vmem:[%s299 + $0x128] sm:$0xff] %v1352
        %1417 = vst [vmem:[%s299 + $0x130] sm:$0xff] %v1353
        %1418 = vst [vmem:[%s299 + $0x138] sm:$0xff] %v1354
        %1419 = vst [vmem:[%s299 + $0x140] sm:$0xff] %v1355
        %1420 = vst [vmem:[%s299 + $0x148] sm:$0xff] %v1356
        %1421 = vst [vmem:[%s299 + $0x150] sm:$0xff] %v1357
        %1422 = vst [vmem:[%s299 + $0x158] sm:$0xff] %v1358
        %1423 = vst [vmem:[%s299 + $0x160] sm:$0xff] %v1359
        %1424 = vst [vmem:[%s299 + $0x168] sm:$0xff] %v1360
        %1425 = vst [vmem:[%s299 + $0x170] sm:$0xff] %v1361
        %1426 = vst [vmem:[%s299 + $0x178] sm:$0xff] %v1362
        %1427 = vst [vmem:[%s299 + $0x180] sm:$0xff] %v1363
        %1428 = vst [vmem:[%s299 + $0x188] sm:$0xff] %v1364
        %1429 = vst [vmem:[%s299 + $0x190] sm:$0xff] %v1365
        %1430 = vst [vmem:[%s299 + $0x198] sm:$0xff] %v1366
        %1431 = vst [vmem:[%s299 + $0x1a0] sm:$0xff] %v1367
        %1432 = vst [vmem:[%s299 + $0x1a8] sm:$0xff] %v1368
        %1433 = vst [vmem:[%s299 + $0x1b0] sm:$0xff] %v1369
        %1434 = vst [vmem:[%s299 + $0x1b8] sm:$0xff] %v1370
        %1435 = vst [vmem:[%s299 + $0x1c0] sm:$0xff] %v1371
        %1436 = vst [vmem:[%s299 + $0x1c8] sm:$0xff] %v1372
        %1437 = vst [vmem:[%s299 + $0x1d0] sm:$0xff] %v1373
        %1438 = vst [vmem:[%s299 + $0x1d8] sm:$0xff] %v1374
        %1439 = vst [vmem:[%s299 + $0x1e0] sm:$0xff] %v1375
        %1440 = vst [vmem:[%s299 + $0x1e8] sm:$0xff] %v1376
        %1441 = vst [vmem:[%s299 + $0x1f0] sm:$0xff] %v1377
        %1442 = vst [vmem:[%s299 + $0x1f8] sm:$0xff] %v1378
        %p1443 = scmp.eq.s32.totalorder %s30, 1
        // Predicated region
        $region49: #{tpu_custom_call.1} parent=31 // pred_check
          %p1444 = pneg %p1443
        $region50: #{tpu_custom_call.1} parent=31 // pred_check_branch
          %1446 = sbr.rel (%p1444) target = $region52
        $region51: #{tpu_custom_call.1} parent=31 // pred_region
          %v1447 = vld [vmem:[%s299] sm:$0xff]
          %v1448 = vld [vmem:[%s299 + $0x8] sm:$0xff]
          %v1449 = vld [vmem:[%s299 + $0x10] sm:$0xff]
          %v1450 = vld [vmem:[%s299 + $0x18] sm:$0xff]
          %v1451 = vld [vmem:[%s299 + $0x20] sm:$0xff]
          %v1452 = vld [vmem:[%s299 + $0x28] sm:$0xff]
          %v1453 = vld [vmem:[%s299 + $0x30] sm:$0xff]
          %v1454 = vld [vmem:[%s299 + $0x38] sm:$0xff]
          %v1455 = vld [vmem:[%s299 + $0x40] sm:$0xff]
          %v1456 = vld [vmem:[%s299 + $0x48] sm:$0xff]
          %v1457 = vld [vmem:[%s299 + $0x50] sm:$0xff]
          %v1458 = vld [vmem:[%s299 + $0x58] sm:$0xff]
          %v1459 = vld [vmem:[%s299 + $0x60] sm:$0xff]
          %v1460 = vld [vmem:[%s299 + $0x68] sm:$0xff]
          %v1461 = vld [vmem:[%s299 + $0x70] sm:$0xff]
          %v1462 = vld [vmem:[%s299 + $0x78] sm:$0xff]
          %v1463 = vld [vmem:[%s299 + $0x80] sm:$0xff]
          %v1464 = vld [vmem:[%s299 + $0x88] sm:$0xff]
          %v1465 = vld [vmem:[%s299 + $0x90] sm:$0xff]
          %v1466 = vld [vmem:[%s299 + $0x98] sm:$0xff]
          %v1467 = vld [vmem:[%s299 + $0xa0] sm:$0xff]
          %v1468 = vld [vmem:[%s299 + $0xa8] sm:$0xff]
          %v1469 = vld [vmem:[%s299 + $0xb0] sm:$0xff]
          %v1470 = vld [vmem:[%s299 + $0xb8] sm:$0xff]
          %v1471 = vld [vmem:[%s299 + $0xc0] sm:$0xff]
          %v1472 = vld [vmem:[%s299 + $0xc8] sm:$0xff]
          %v1473 = vld [vmem:[%s299 + $0xd0] sm:$0xff]
          %v1474 = vld [vmem:[%s299 + $0xd8] sm:$0xff]
          %v1475 = vld [vmem:[%s299 + $0xe0] sm:$0xff]
          %v1476 = vld [vmem:[%s299 + $0xe8] sm:$0xff]
          %v1477 = vld [vmem:[%s299 + $0xf0] sm:$0xff]
          %v1478 = vld [vmem:[%s299 + $0xf8] sm:$0xff]
          %v1479 = vld [vmem:[%s299 + $0x100] sm:$0xff]
          %v1480 = vld [vmem:[%s299 + $0x108] sm:$0xff]
          %v1481 = vld [vmem:[%s299 + $0x110] sm:$0xff]
          %v1482 = vld [vmem:[%s299 + $0x118] sm:$0xff]
          %v1483 = vld [vmem:[%s299 + $0x120] sm:$0xff]
          %v1484 = vld [vmem:[%s299 + $0x128] sm:$0xff]
          %v1485 = vld [vmem:[%s299 + $0x130] sm:$0xff]
          %v1486 = vld [vmem:[%s299 + $0x138] sm:$0xff]
          %v1487 = vld [vmem:[%s299 + $0x140] sm:$0xff]
          %v1488 = vld [vmem:[%s299 + $0x148] sm:$0xff]
          %v1489 = vld [vmem:[%s299 + $0x150] sm:$0xff]
          %v1490 = vld [vmem:[%s299 + $0x158] sm:$0xff]
          %v1491 = vld [vmem:[%s299 + $0x160] sm:$0xff]
          %v1492 = vld [vmem:[%s299 + $0x168] sm:$0xff]
          %v1493 = vld [vmem:[%s299 + $0x170] sm:$0xff]
          %v1494 = vld [vmem:[%s299 + $0x178] sm:$0xff]
          %v1495 = vld [vmem:[%s299 + $0x180] sm:$0xff]
          %v1496 = vld [vmem:[%s299 + $0x188] sm:$0xff]
          %v1497 = vld [vmem:[%s299 + $0x190] sm:$0xff]
          %v1498 = vld [vmem:[%s299 + $0x198] sm:$0xff]
          %v1499 = vld [vmem:[%s299 + $0x1a0] sm:$0xff]
          %v1500 = vld [vmem:[%s299 + $0x1a8] sm:$0xff]
          %v1501 = vld [vmem:[%s299 + $0x1b0] sm:$0xff]
          %v1502 = vld [vmem:[%s299 + $0x1b8] sm:$0xff]
          %v1503 = vld [vmem:[%s299 + $0x1c0] sm:$0xff]
          %v1504 = vld [vmem:[%s299 + $0x1c8] sm:$0xff]
          %v1505 = vld [vmem:[%s299 + $0x1d0] sm:$0xff]
          %v1506 = vld [vmem:[%s299 + $0x1d8] sm:$0xff]
          %v1507 = vld [vmem:[%s299 + $0x1e0] sm:$0xff]
          %v1508 = vld [vmem:[%s299 + $0x1e8] sm:$0xff]
          %v1509 = vld [vmem:[%s299 + $0x1f0] sm:$0xff]
          %v1510 = vld [vmem:[%s299 + $0x1f8] sm:$0xff]
          %v1511 = vmax.f32 %v1447, 0.0
          %v1512 = vmax.f32 %v1448, 0.0
          %v1513 = vmax.f32 %v1449, 0.0
          %v1514 = vmax.f32 %v1450, 0.0
          %v1515 = vmax.f32 %v1451, 0.0
          %v1516 = vmax.f32 %v1452, 0.0
          %v1517 = vmax.f32 %v1453, 0.0
          %v1518 = vmax.f32 %v1454, 0.0
          %v1519 = vmax.f32 %v1455, 0.0
          %v1520 = vmax.f32 %v1456, 0.0
          %v1521 = vmax.f32 %v1457, 0.0
          %v1522 = vmax.f32 %v1458, 0.0
          %v1523 = vmax.f32 %v1459, 0.0
          %v1524 = vmax.f32 %v1460, 0.0
          %v1525 = vmax.f32 %v1461, 0.0
          %v1526 = vmax.f32 %v1462, 0.0
          %v1527 = vmax.f32 %v1463, 0.0
          %v1528 = vmax.f32 %v1464, 0.0
          %v1529 = vmax.f32 %v1465, 0.0
          %v1530 = vmax.f32 %v1466, 0.0
          %v1531 = vmax.f32 %v1467, 0.0
          %v1532 = vmax.f32 %v1468, 0.0
          %v1533 = vmax.f32 %v1469, 0.0
          %v1534 = vmax.f32 %v1470, 0.0
          %v1535 = vmax.f32 %v1471, 0.0
          %v1536 = vmax.f32 %v1472, 0.0
          %v1537 = vmax.f32 %v1473, 0.0
          %v1538 = vmax.f32 %v1474, 0.0
          %v1539 = vmax.f32 %v1475, 0.0
          %v1540 = vmax.f32 %v1476, 0.0
          %v1541 = vmax.f32 %v1477, 0.0
          %v1542 = vmax.f32 %v1478, 0.0
          %v1543 = vmax.f32 %v1479, 0.0
          %v1544 = vmax.f32 %v1480, 0.0
          %v1545 = vmax.f32 %v1481, 0.0
          %v1546 = vmax.f32 %v1482, 0.0
          %v1547 = vmax.f32 %v1483, 0.0
          %v1548 = vmax.f32 %v1484, 0.0
          %v1549 = vmax.f32 %v1485, 0.0
          %v1550 = vmax.f32 %v1486, 0.0
          %v1551 = vmax.f32 %v1487, 0.0
          %v1552 = vmax.f32 %v1488, 0.0
          %v1553 = vmax.f32 %v1489, 0.0
          %v1554 = vmax.f32 %v1490, 0.0
          %v1555 = vmax.f32 %v1491, 0.0
          %v1556 = vmax.f32 %v1492, 0.0
          %v1557 = vmax.f32 %v1493, 0.0
          %v1558 = vmax.f32 %v1494, 0.0
          %v1559 = vmax.f32 %v1495, 0.0
          %v1560 = vmax.f32 %v1496, 0.0
          %v1561 = vmax.f32 %v1497, 0.0
          %v1562 = vmax.f32 %v1498, 0.0
          %v1563 = vmax.f32 %v1499, 0.0
          %v1564 = vmax.f32 %v1500, 0.0
          %v1565 = vmax.f32 %v1501, 0.0
          %v1566 = vmax.f32 %v1502, 0.0
          %v1567 = vmax.f32 %v1503, 0.0
          %v1568 = vmax.f32 %v1504, 0.0
          %v1569 = vmax.f32 %v1505, 0.0
          %v1570 = vmax.f32 %v1506, 0.0
          %v1571 = vmax.f32 %v1507, 0.0
          %v1572 = vmax.f32 %v1508, 0.0
          %v1573 = vmax.f32 %v1509, 0.0
          %v1574 = vmax.f32 %v1510, 0.0
          %1575 = vst [vmem:[%s299] sm:$0xff] %v1511
          %1576 = vst [vmem:[%s299 + $0x8] sm:$0xff] %v1512
          %1577 = vst [vmem:[%s299 + $0x10] sm:$0xff] %v1513
          %1578 = vst [vmem:[%s299 + $0x18] sm:$0xff] %v1514
          %1579 = vst [vmem:[%s299 + $0x20] sm:$0xff] %v1515
          %1580 = vst [vmem:[%s299 + $0x28] sm:$0xff] %v1516
          %1581 = vst [vmem:[%s299 + $0x30] sm:$0xff] %v1517
          %1582 = vst [vmem:[%s299 + $0x38] sm:$0xff] %v1518
          %1583 = vst [vmem:[%s299 + $0x40] sm:$0xff] %v1519
          %1584 = vst [vmem:[%s299 + $0x48] sm:$0xff] %v1520
          %1585 = vst [vmem:[%s299 + $0x50] sm:$0xff] %v1521
          %1586 = vst [vmem:[%s299 + $0x58] sm:$0xff] %v1522
          %1587 = vst [vmem:[%s299 + $0x60] sm:$0xff] %v1523
          %1588 = vst [vmem:[%s299 + $0x68] sm:$0xff] %v1524
          %1589 = vst [vmem:[%s299 + $0x70] sm:$0xff] %v1525
          %1590 = vst [vmem:[%s299 + $0x78] sm:$0xff] %v1526
          %1591 = vst [vmem:[%s299 + $0x80] sm:$0xff] %v1527
          %1592 = vst [vmem:[%s299 + $0x88] sm:$0xff] %v1528
          %1593 = vst [vmem:[%s299 + $0x90] sm:$0xff] %v1529
          %1594 = vst [vmem:[%s299 + $0x98] sm:$0xff] %v1530
          %1595 = vst [vmem:[%s299 + $0xa0] sm:$0xff] %v1531
          %1596 = vst [vmem:[%s299 + $0xa8] sm:$0xff] %v1532
          %1597 = vst [vmem:[%s299 + $0xb0] sm:$0xff] %v1533
          %1598 = vst [vmem:[%s299 + $0xb8] sm:$0xff] %v1534
          %1599 = vst [vmem:[%s299 + $0xc0] sm:$0xff] %v1535
          %1600 = vst [vmem:[%s299 + $0xc8] sm:$0xff] %v1536
          %1601 = vst [vmem:[%s299 + $0xd0] sm:$0xff] %v1537
          %1602 = vst [vmem:[%s299 + $0xd8] sm:$0xff] %v1538
          %1603 = vst [vmem:[%s299 + $0xe0] sm:$0xff] %v1539
          %1604 = vst [vmem:[%s299 + $0xe8] sm:$0xff] %v1540
          %1605 = vst [vmem:[%s299 + $0xf0] sm:$0xff] %v1541
          %1606 = vst [vmem:[%s299 + $0xf8] sm:$0xff] %v1542
          %1607 = vst [vmem:[%s299 + $0x100] sm:$0xff] %v1543
          %1608 = vst [vmem:[%s299 + $0x108] sm:$0xff] %v1544
          %1609 = vst [vmem:[%s299 + $0x110] sm:$0xff] %v1545
          %1610 = vst [vmem:[%s299 + $0x118] sm:$0xff] %v1546
          %1611 = vst [vmem:[%s299 + $0x120] sm:$0xff] %v1547
          %1612 = vst [vmem:[%s299 + $0x128] sm:$0xff] %v1548
          %1613 = vst [vmem:[%s299 + $0x130] sm:$0xff] %v1549
          %1614 = vst [vmem:[%s299 + $0x138] sm:$0xff] %v1550
          %1615 = vst [vmem:[%s299 + $0x140] sm:$0xff] %v1551
          %1616 = vst [vmem:[%s299 + $0x148] sm:$0xff] %v1552
          %1617 = vst [vmem:[%s299 + $0x150] sm:$0xff] %v1553
          %1618 = vst [vmem:[%s299 + $0x158] sm:$0xff] %v1554
          %1619 = vst [vmem:[%s299 + $0x160] sm:$0xff] %v1555
          %1620 = vst [vmem:[%s299 + $0x168] sm:$0xff] %v1556
          %1621 = vst [vmem:[%s299 + $0x170] sm:$0xff] %v1557
          %1622 = vst [vmem:[%s299 + $0x178] sm:$0xff] %v1558
          %1623 = vst [vmem:[%s299 + $0x180] sm:$0xff] %v1559
          %1624 = vst [vmem:[%s299 + $0x188] sm:$0xff] %v1560
          %1625 = vst [vmem:[%s299 + $0x190] sm:$0xff] %v1561
          %1626 = vst [vmem:[%s299 + $0x198] sm:$0xff] %v1562
          %1627 = vst [vmem:[%s299 + $0x1a0] sm:$0xff] %v1563
          %1628 = vst [vmem:[%s299 + $0x1a8] sm:$0xff] %v1564
          %1629 = vst [vmem:[%s299 + $0x1b0] sm:$0xff] %v1565
          %1630 = vst [vmem:[%s299 + $0x1b8] sm:$0xff] %v1566
          %1631 = vst [vmem:[%s299 + $0x1c0] sm:$0xff] %v1567
          %1632 = vst [vmem:[%s299 + $0x1c8] sm:$0xff] %v1568
          %1633 = vst [vmem:[%s299 + $0x1d0] sm:$0xff] %v1569
          %1634 = vst [vmem:[%s299 + $0x1d8] sm:$0xff] %v1570
          %1635 = vst [vmem:[%s299 + $0x1e0] sm:$0xff] %v1571
          %1636 = vst [vmem:[%s299 + $0x1e8] sm:$0xff] %v1572
          %1637 = vst [vmem:[%s299 + $0x1f0] sm:$0xff] %v1573
          %1638 = vst [vmem:[%s299 + $0x1f8] sm:$0xff] %v1574
        $region52: #{tpu_custom_call.1} parent=31 // pred_fallthru
          _
        %s1639 = sand.u32 %s134, 1
        %s1640 = scalar_lea.sflag [#allocation4], %s1639
        %s1641 = sand.u32 %s134, 1
        %s1642 = smul.addr %s1641, 512
        %s1643 = scalar_lea.vmem [#allocation8], %s1642
        // Predicated region
        $region53: #{tpu_custom_call.1} parent=31 // pred_check
          %p1644 = pneg %p144
        $region54: #{tpu_custom_call.1} parent=31 // pred_check_branch
          %1646 = sbr.rel (%p1644) target = $region56
        $region55: #{tpu_custom_call.1} parent=31 // pred_region
          %s1647 = smul.u32 32, %s28
          %s1648 = smul.u32 2, %s29
          %1650 = vsyncadd %s1640, 0
          %s1651 = smul.addr %s1647, 4
          %s1652 = sadd.s32 %s1648, %s1651
          %s1653 = smul.addr %s1652, 8
          %s1654 = scalar_lea.hbm %s3, %s1653
          %s1655 = sshll.u32 %s1643, 4
          %s1656 = int_to_ptr.vmem [resolvable:$true] %s1655
          %s1657 = sshll.u32 %s1654, 4
          %s1658 = int_to_ptr.hbm [resolvable:$true] %s1657
          %1663 = dma.vmem_to_hbm [thread:$0]  %s1656, 8192, %s1658, %s1640, 256, 512, 16
        $region56: #{tpu_custom_call.1} parent=31 // pred_fallthru
          _
      $region32: #{tpu_custom_call.1} parent=5 // pred_fallthru
        _
      %p1664 = scmp.le.s32.totalorder 2, %s18
      // Predicated region
      $region57: #{tpu_custom_call.1} parent=5 // pred_check
        %p1665 = pneg %p1664
      $region58: #{tpu_custom_call.1} parent=5 // pred_check_branch
        %1667 = sbr.rel (%p1665) target = $region60
      $region59: #{tpu_custom_call.1} parent=5 // pred_region
        %s1668 = ssub.s32 %s18, 2
        // Predicated region
        $region61: #{tpu_custom_call.1} parent=59 // pred_check
          %p1669 = pneg %p150
        $region62: #{tpu_custom_call.1} parent=59 // pred_check_branch
          %1671 = sbr.rel (%p1669) target = $region64
        $region63: #{tpu_custom_call.1} parent=59 // pred_region
          %s1672 = sand.u32 %s135, 1
          %s1673 = scalar_lea.sflag [#allocation4], %s1672
          %s1674 = sand.u32 %s135, 1
          %s1675 = smul.addr %s1674, 512
          %s1676 = scalar_lea.vmem [#allocation8], %s1675
          %1678 = dma.done %s1673, 8192
        $region64: #{tpu_custom_call.1} parent=59 // pred_fallthru
          _
      $region60: #{tpu_custom_call.1} parent=5 // pred_fallthru
        _
    $region6: #{tpu_custom_call.1} parent=1 // loop_footer
      %s22 = sadd.s32 1, %s18
    $region7: #{tpu_custom_call.1} parent=1 // loop_footer_branch
      %17 = sbr.rel target = $region3
    $region8: #{tpu_custom_call.1} parent=1 // loop_exit
      _
    %1679 = vsyncpa [#allocation3], 1
    %s1680 = scalar_lea.sflag [#allocation3], 1
    %1681 = vsyncpa %s1680, 1
    %1682 = vsyncpa [#allocation6], 1
    %s1683 = scalar_lea.sflag [#allocation6], 1
    %1684 = vsyncpa %s1683, 1
    %1685 = vsyncpa [#allocation4], 1
    %s1686 = scalar_lea.sflag [#allocation4], 1
    %1687 = vsyncpa %s1686, 1

</llo_original>
